<compile_context>
chip_gen: v5e
topology: v5e:2x2
jax: 0.10.0
libtpu: 0.0.40
codegen_flags: <defaults>
</compile_context>

<pallas_src>
import functools
import math

import jax
import jax.numpy as jnp
import numpy as np
from jax.experimental import pallas as pl
from jax.experimental.pallas import tpu as pltpu

# Keep f32 matmuls exact on TPU so the kernel matches the pure-JAX reference.
jax.config.update("jax_default_matmul_precision", "highest")

_LANES = 128  # one vreg lane width; every packed matrix is exactly 128 lanes wide


# --------------------------------------------------------------------------
# Fused kernel: 3x EnsembleMLP + Bernoulli sparse mask + per-output dot + bias.
# All intermediates are full 128-lane (B, 128) f32 slabs; no lane-offset slices.
# --------------------------------------------------------------------------
def _eql_fused_kernel(seed_ref, obs_ref, slab_ref, out_ref, *, layout):
    f32 = jnp.float32
    hi = jax.lax.Precision.HIGHEST
    obs = obs_ref[...].astype(f32)                       # (B, num_inputs)
    B = obs.shape[0]

    def mat(name):                                       # tile-aligned row-band view
        r0, rows = layout[name]
        return slab_ref[r0:r0 + rows, :].astype(f32)

    def vec(name):                                       # single bias row
        r0, _ = layout[name]
        return slab_ref[r0:r0 + 1, :].astype(f32)

    def net(tag):                                        # one EnsembleMLP, 3 MXU tiles
        h = jnp.dot(obs, mat(f"w1_{tag}"), precision=hi,
                    preferred_element_type=f32) + vec(f"b1_{tag}")
        h = jnp.maximum(h, 0.0)
        h = jnp.dot(h, mat(f"w2_{tag}"), precision=hi,
                    preferred_element_type=f32) + vec(f"b2_{tag}")
        h = jnp.maximum(h, 0.0)
        return jnp.dot(h, mat(f"w3_{tag}"), precision=hi,
                       preferred_element_type=f32) + vec(f"b3_{tag}")

    y_w = net("w")        # constw_base in lanes [0, M*D); zeros elsewhere
    y_s = net("s")        # scores      in lanes [0, M*D); zeros elsewhere
    y_b = net("b")        # constb      in lanes [M*D, M*D + M); zeros elsewhere

    # sample_sparse_constw(0): Bernoulli(sigmoid(scores)) mask.
    # Uniforms from a murmur3-finalizer style int32 hash (VPU-only ops; works on
    # Mosaic and in interpret mode). Arithmetic >> followed by & == logical >>.
    row = jax.lax.broadcasted_iota(jnp.int32, (B, _LANES), 0)
    col = jax.lax.broadcasted_iota(jnp.int32, (B, _LANES), 1)
    h = (row * jnp.int32(_LANES) + col) * jnp.int32(-1640531527) + seed_ref[0]
    h = h ^ ((h >> 16) & jnp.int32(0xFFFF))
    h = h * jnp.int32(-2048144789)                       # 0x85EBCA6B
    h = h ^ ((h >> 13) & jnp.int32(0x7FFFF))
    h = h * jnp.int32(-1028477387)                       # 0xC2B2AE35
    h = h ^ ((h >> 16) & jnp.int32(0xFFFF))
    u = (h & jnp.int32(0x7FFFFF)).astype(f32) * jnp.float32(1.0 / (1 << 23))

    sig = 1.0 / (1.0 + jnp.exp(-y_s))                    # EUP exp + reciprocal
    mask = (u < sig).astype(f32)
    cw = y_w * mask                                      # masked constw, (B, 128)

    # out[b,m] = <constw[b,m,:], obs[b,:D]> + constb[b,m]; the column selection
    # of obs and the segment-sum both live in packed 0/1 constants (MXU work).
    x_rep = jnp.dot(obs, mat("rep"), precision=hi, preferred_element_type=f32)
    z = cw * x_rep
    out_ref[...] = cw + jnp.dot(z, mat("seg"), precision=hi,
                                preferred_element_type=f32) + y_b


# --------------------------------------------------------------------------
# One-time host-side packing of all parameters + constants into a single
# 16-row-aligned, 128-lane slab (tile-aligned for both f32 and bf16).
# --------------------------------------------------------------------------
def pack_eql_params(params_w, params_s, params_b, *, num_inputs, latent_dim,
                    dtype=jnp.bfloat16):
    M, L, H = np.asarray(params_w[0]).shape              # members, latent, hidden
    D = np.asarray(params_w[4]).shape[2]                 # wshape
    bsh = np.asarray(params_b[4]).shape[2]               # bshape
    assert L == latent_dim and bsh == 1                  # depth == 0 case
    assert M * H <= _LANES and M * D + M <= _LANES and num_inputs <= _LANES
    out_off = M * D                                      # output lanes start here

    layout = {}
    blocks = []
    rows_so_far = 0

    def add(name, arr):
        nonlocal rows_so_far
        rows = arr.shape[0]
        pad = (-rows) % 16                               # 16-row bands
        if pad:
            arr = np.pad(arr, ((0, pad), (0, 0)))
        layout[name] = (rows_so_far, rows)
        rows_so_far += arr.shape[0]
        blocks.append(arr)

    def pack_net(tag, params, colmap3, out_size):
        w1, b1, w2, b2, w3, b3 = [np.asarray(p, np.float32) for p in params]
        # layer 1: (num_inputs, 128); x-columns are zero rows (obs fed directly)
        a = np.zeros((num_inputs, _LANES), np.float32)
        for m in range(M):
            a[num_inputs - latent_dim:, m * H:(m + 1) * H] = w1[m]
        add(f"w1_{tag}", a)
        a = np.zeros((1, _LANES), np.float32)
        for m in range(M):
            a[0, m * H:(m + 1) * H] = b1[m, 0]
        add(f"b1_{tag}", a)
        # layer 2: per-net block-diagonal (128, 128)
        a = np.zeros((_LANES, _LANES), np.float32)
        for m in range(M):
            a[m * H:(m + 1) * H, m * H:(m + 1) * H] = w2[m]
        add(f"w2_{tag}", a)
        a = np.zeros((1, _LANES), np.float32)
        for m in range(M):
            a[0, m * H:(m + 1) * H] = b2[m, 0]
        add(f"b2_{tag}", a)
        # layer 3: (128, 128); output columns placed per colmap3
        a = np.zeros((_LANES, _LANES), np.float32)
        for m in range(M):
            for j in range(out_size):
                a[m * H:(m + 1) * H, colmap3(m, j)] = w3[m, :, j]
        add(f"w3_{tag}", a)
        a = np.zeros((1, _LANES), np.float32)
        for m in range(M):
            for j in range(out_size):
                a[0, colmap3(m, j)] = b3[m, 0, j]
        add(f"b3_{tag}", a)

    pack_net("w", params_w, lambda m, j: m * D + j, D)          # constw_base
    pack_net("s", params_s, lambda m, j: m * D + j, D)          # scores
    pack_net("b", params_b, lambda m, j: out_off + m, bsh)      # constb -> out lanes

    # rep: obs (B, num_inputs) -> x replicated across members, (num_inputs, 128)
    a = np.zeros((num_inputs, _LANES), np.float32)
    for m in range(M):
        for d in range(D):
            a[d, m * D + d] = 1.0
    add("rep", a)
    # seg: segment-sum of cw*x into the out lanes, (128, 128)
    a = np.zeros((_LANES, _LANES), np.float32)
    for m in range(M):
        for d in range(D):
            a[m * D + d, out_off + m] = 1.0
    add("seg", a)

    slab = np.concatenate(blocks, axis=0)
    return jnp.asarray(slab).astype(dtype), layout


# --------------------------------------------------------------------------
# Wrapper: single grid-less pallas_call; one VMEM param slab in, one lane-dense
# (B, 128) slab out (sliced here).  Pass a fresh `seed` every forward call.
# TODO(synk): for large production batches add a grid over B ("parallel") so
# v7x's two TensorCores are both used; unnecessary at B=2.
# --------------------------------------------------------------------------
def eql_forward_fused(obs, slab, layout, seed, *, num_outputs, wshape):
    B = obs.shape[0]
    kern = functools.partial(_eql_fused_kernel, layout=layout)
    vmem = pl.BlockSpec(memory_space=pltpu.MemorySpace.VMEM)
    smem = pl.BlockSpec(memory_space=pltpu.MemorySpace.SMEM)
    slab_out = pl.pallas_call(
        kern,
        out_shape=jax.ShapeDtypeStruct((B, _LANES), jnp.float32),
        in_specs=[smem, vmem, vmem],
        out_specs=vmem,
    )(seed, obs, slab)
    md = num_outputs * wshape
    cw_flat = slab_out[:, :md]                  # == self.constw (member-major, flat)
    out = slab_out[:, md:md + num_outputs]      # == forward() output
    return out, cw_flat


# --------------------------------------------------------------------------
# Deterministic parameter init (same distributions as EnsembleLinearLayer).
# --------------------------------------------------------------------------
def init_ensemble_mlp(key, num_members, in_size, hidden, out_size,
                      last_bias_fill=None):
    ks = jax.random.split(key, 6)

    def lin(kw, kb, ni, no):
        bound = 1.0 / math.sqrt(ni)
        w = jax.random.uniform(kw, (num_members, ni, no), jnp.float32, -bound, bound)
        b = jax.random.uniform(kb, (num_members, 1, no), jnp.float32, -bound, bound)
        return w, b

    w1, b1 = lin(ks[0], ks[1], in_size, hidden)
    w2, b2 = lin(ks[2], ks[3], hidden, hidden)
    w3, b3 = lin(ks[4], ks[5], hidden, out_size)
    if last_bias_fill is not None:
        b3 = jnp.full_like(b3, last_bias_fill)   # latent2score bias.fill_(3)
    return (w1, b1, w2, b2, w3, b3)


if __name__ == "__main__":
    num_inputs, latent_dim, num_outputs, hidden = 16, 8, 4, 32
    D = num_inputs - latent_dim          # = wshape (depth == len(op_list) == 0)
    wshape, bshape = D, 1
    batch = 2

    key = jax.random.PRNGKey(0)
    k_obs, k_w, k_s, k_b = jax.random.split(key, 4)

    obs = jax.random.normal(k_obs, (batch, num_inputs), jnp.float32)
    params_w = init_ensemble_mlp(k_w, num_outputs, latent_dim, hidden, wshape)
    params_s = init_ensemble_mlp(k_s, num_outputs, latent_dim, hidden, wshape,
                                 last_bias_fill=3.0)
    params_b = init_ensemble_mlp(k_b, num_outputs, latent_dim, hidden, bshape)

    slab, layout = pack_eql_params(params_w, params_s, params_b,
                                   num_inputs=num_inputs, latent_dim=latent_dim,
                                   dtype=jnp.bfloat16)      # one-time packing
    seed = jnp.array([42], dtype=jnp.int32)                 # vary per call in training

    out, cw_flat = eql_forward_fused(obs, slab, layout, seed,
                                     num_outputs=num_outputs, wshape=wshape)
    out = jax.block_until_ready(out)
    cw_flat = jax.block_until_ready(cw_flat)
    reguloss = 0.0   # depth == 0 -> no op stages, regu loss is 0

    # ---------------- pure-JAX reference check ----------------
    # Reference uses the same bf16-rounded weights the kernel slab carries.
    def q(p):
        return tuple(a.astype(jnp.bfloat16).astype(jnp.float32) for a in p)

    pw, ps, pb = q(params_w), q(params_s), q(params_b)

    def mlp_ref(xx, p):
        w1, b1, w2, b2, w3, b3 = p
        h = xx[:, None, None, :] @ w1 + b1
        h = jnp.maximum(h, 0.0)
        h = h @ w2 + b2
        h = jnp.maximum(h, 0.0)
        h = h @ w3 + b3
        return h[:, :, 0, :]

    latent = obs[:, -latent_dim:]
    x = obs[:, :D]
    cwb_r = mlp_ref(latent, pw)                     # (B, O, wshape) constw_base
    cb_r = mlp_ref(latent, pb)[:, :, 0]             # (B, O)         constb

    cw_k = cw_flat.reshape(batch, num_outputs, wshape)
    # Bernoulli-mask semantics: every masked weight is either 0 or constw_base.
    # (The uniform stream is the in-kernel hash, so we verify gating structure.)
    gate_err = jnp.minimum(jnp.abs(cw_k), jnp.abs(cw_k - cwb_r))
    assert bool(jnp.all(gate_err < 1e-3))
    # The output must equal the masked dot product plus the constb bias.
    out_ref = jnp.einsum("bod,bd->bo", cw_k, x) + cb_r
    assert out.shape == (batch, num_outputs)
    assert jnp.allclose(out, out_ref, rtol=2e-3, atol=2e-3)
    # TODO(synk): opfunc symbolic-operator stages and the mode=1 Gumbel path are
    # unreachable because the module-level op_list is empty (depth == 0).
    print("KERNEL_OK")
</pallas_src>

<mosaic_0001>
module attributes {stable_mosaic.version = 11 : i64} {
  func.func @_eql_fused_kernel(%arg0: memref<1xi32, #tpu.memory_space<smem>>, %arg1: memref<2x16xf32, #tpu.memory_space<vmem>>, %arg2: memref<1104x128xbf16, #tpu.memory_space<vmem>>, %arg3: memref<2x128xf32, #tpu.memory_space<vmem>>) attributes {dimension_semantics = [], scalar_prefetch = 0 : i64, scratch_operands = 0 : i64, tpu.core_type = #tpu.core_type<tc>} {
    %c0 = arith.constant 0 : index
    %c0_0 = arith.constant 0 : index
    %0 = vector.load %arg1[%c0, %c0_0] : memref<2x16xf32, #tpu.memory_space<vmem>>, vector<2x16xf32>
    %c0_1 = arith.constant 0 : index
    %c0_2 = arith.constant 0 : index
    %1 = vector.load %arg2[%c0_1, %c0_2] : memref<1104x128xbf16, #tpu.memory_space<vmem>>, vector<16x128xbf16>
    %2 = arith.extf %1 : vector<16x128xbf16> to vector<16x128xf32>
    %cst = arith.constant dense<0.000000e+00> : vector<2x128xf32>
    %3 = tpu.matmul %0, %2, %cst {dimension_numbers = #tpu.dot_dimension_numbers<[1], [0], [0], [1], [0, 0, 1, 1], [], []>, precision = #tpu.contract_precision<fp32>} : vector<2x16xf32>, vector<16x128xf32>, vector<2x128xf32> -> vector<2x128xf32>
    %c16 = arith.constant 16 : index
    %c0_3 = arith.constant 0 : index
    %4 = vector.load %arg2[%c16, %c0_3] : memref<1104x128xbf16, #tpu.memory_space<vmem>>, vector<1x128xbf16>
    %5 = arith.extf %4 : vector<1x128xbf16> to vector<1x128xf32>
    %6 = vector.broadcast %5 : vector<1x128xf32> to vector<2x128xf32>
    %7 = arith.addf %3, %6 : vector<2x128xf32>
    %cst_4 = arith.constant 0.000000e+00 : f32
    %8 = vector.broadcast %cst_4 : f32 to vector<2x128xf32>
    %9 = arith.maximumf %7, %8 : vector<2x128xf32>
    %c32 = arith.constant 32 : index
    %c0_5 = arith.constant 0 : index
    %10 = vector.load %arg2[%c32, %c0_5] : memref<1104x128xbf16, #tpu.memory_space<vmem>>, vector<128x128xbf16>
    %11 = arith.extf %10 : vector<128x128xbf16> to vector<128x128xf32>
    %cst_6 = arith.constant dense<0.000000e+00> : vector<2x128xf32>
    %12 = tpu.matmul %9, %11, %cst_6 {dimension_numbers = #tpu.dot_dimension_numbers<[1], [0], [0], [1], [0, 0, 1, 1], [], []>, precision = #tpu.contract_precision<fp32>} : vector<2x128xf32>, vector<128x128xf32>, vector<2x128xf32> -> vector<2x128xf32>
    %c160 = arith.constant 160 : index
    %c0_7 = arith.constant 0 : index
    %13 = vector.load %arg2[%c160, %c0_7] : memref<1104x128xbf16, #tpu.memory_space<vmem>>, vector<1x128xbf16>
    %14 = arith.extf %13 : vector<1x128xbf16> to vector<1x128xf32>
    %15 = vector.broadcast %14 : vector<1x128xf32> to vector<2x128xf32>
    %16 = arith.addf %12, %15 : vector<2x128xf32>
    %cst_8 = arith.constant 0.000000e+00 : f32
    %17 = vector.broadcast %cst_8 : f32 to vector<2x128xf32>
    %18 = arith.maximumf %16, %17 : vector<2x128xf32>
    %c176 = arith.constant 176 : index
    %c0_9 = arith.constant 0 : index
    %19 = vector.load %arg2[%c176, %c0_9] : memref<1104x128xbf16, #tpu.memory_space<vmem>>, vector<128x128xbf16>
    %20 = arith.extf %19 : vector<128x128xbf16> to vector<128x128xf32>
    %cst_10 = arith.constant dense<0.000000e+00> : vector<2x128xf32>
    %21 = tpu.matmul %18, %20, %cst_10 {dimension_numbers = #tpu.dot_dimension_numbers<[1], [0], [0], [1], [0, 0, 1, 1], [], []>, precision = #tpu.contract_precision<fp32>} : vector<2x128xf32>, vector<128x128xf32>, vector<2x128xf32> -> vector<2x128xf32>
    %c304 = arith.constant 304 : index
    %c0_11 = arith.constant 0 : index
    %22 = vector.load %arg2[%c304, %c0_11] : memref<1104x128xbf16, #tpu.memory_space<vmem>>, vector<1x128xbf16>
    %23 = arith.extf %22 : vector<1x128xbf16> to vector<1x128xf32>
    %24 = vector.broadcast %23 : vector<1x128xf32> to vector<2x128xf32>
    %25 = arith.addf %21, %24 : vector<2x128xf32>
    %c320 = arith.constant 320 : index
    %c0_12 = arith.constant 0 : index
    %26 = vector.load %arg2[%c320, %c0_12] : memref<1104x128xbf16, #tpu.memory_space<vmem>>, vector<16x128xbf16>
    %27 = arith.extf %26 : vector<16x128xbf16> to vector<16x128xf32>
    %cst_13 = arith.constant dense<0.000000e+00> : vector<2x128xf32>
    %28 = tpu.matmul %0, %27, %cst_13 {dimension_numbers = #tpu.dot_dimension_numbers<[1], [0], [0], [1], [0, 0, 1, 1], [], []>, precision = #tpu.contract_precision<fp32>} : vector<2x16xf32>, vector<16x128xf32>, vector<2x128xf32> -> vector<2x128xf32>
    %c336 = arith.constant 336 : index
    %c0_14 = arith.constant 0 : index
    %29 = vector.load %arg2[%c336, %c0_14] : memref<1104x128xbf16, #tpu.memory_space<vmem>>, vector<1x128xbf16>
    %30 = arith.extf %29 : vector<1x128xbf16> to vector<1x128xf32>
    %31 = vector.broadcast %30 : vector<1x128xf32> to vector<2x128xf32>
    %32 = arith.addf %28, %31 : vector<2x128xf32>
    %cst_15 = arith.constant 0.000000e+00 : f32
    %33 = vector.broadcast %cst_15 : f32 to vector<2x128xf32>
    %34 = arith.maximumf %32, %33 : vector<2x128xf32>
    %c352 = arith.constant 352 : index
    %c0_16 = arith.constant 0 : index
    %35 = vector.load %arg2[%c352, %c0_16] : memref<1104x128xbf16, #tpu.memory_space<vmem>>, vector<128x128xbf16>
    %36 = arith.extf %35 : vector<128x128xbf16> to vector<128x128xf32>
    %cst_17 = arith.constant dense<0.000000e+00> : vector<2x128xf32>
    %37 = tpu.matmul %34, %36, %cst_17 {dimension_numbers = #tpu.dot_dimension_numbers<[1], [0], [0], [1], [0, 0, 1, 1], [], []>, precision = #tpu.contract_precision<fp32>} : vector<2x128xf32>, vector<128x128xf32>, vector<2x128xf32> -> vector<2x128xf32>
    %c480 = arith.constant 480 : index
    %c0_18 = arith.constant 0 : index
    %38 = vector.load %arg2[%c480, %c0_18] : memref<1104x128xbf16, #tpu.memory_space<vmem>>, vector<1x128xbf16>
    %39 = arith.extf %38 : vector<1x128xbf16> to vector<1x128xf32>
    %40 = vector.broadcast %39 : vector<1x128xf32> to vector<2x128xf32>
    %41 = arith.addf %37, %40 : vector<2x128xf32>
    %cst_19 = arith.constant 0.000000e+00 : f32
    %42 = vector.broadcast %cst_19 : f32 to vector<2x128xf32>
    %43 = arith.maximumf %41, %42 : vector<2x128xf32>
    %c496 = arith.constant 496 : index
    %c0_20 = arith.constant 0 : index
    %44 = vector.load %arg2[%c496, %c0_20] : memref<1104x128xbf16, #tpu.memory_space<vmem>>, vector<128x128xbf16>
    %45 = arith.extf %44 : vector<128x128xbf16> to vector<128x128xf32>
    %cst_21 = arith.constant dense<0.000000e+00> : vector<2x128xf32>
    %46 = tpu.matmul %43, %45, %cst_21 {dimension_numbers = #tpu.dot_dimension_numbers<[1], [0], [0], [1], [0, 0, 1, 1], [], []>, precision = #tpu.contract_precision<fp32>} : vector<2x128xf32>, vector<128x128xf32>, vector<2x128xf32> -> vector<2x128xf32>
    %c624 = arith.constant 624 : index
    %c0_22 = arith.constant 0 : index
    %47 = vector.load %arg2[%c624, %c0_22] : memref<1104x128xbf16, #tpu.memory_space<vmem>>, vector<1x128xbf16>
    %48 = arith.extf %47 : vector<1x128xbf16> to vector<1x128xf32>
    %49 = vector.broadcast %48 : vector<1x128xf32> to vector<2x128xf32>
    %50 = arith.addf %46, %49 : vector<2x128xf32>
    %c640 = arith.constant 640 : index
    %c0_23 = arith.constant 0 : index
    %51 = vector.load %arg2[%c640, %c0_23] : memref<1104x128xbf16, #tpu.memory_space<vmem>>, vector<16x128xbf16>
    %52 = arith.extf %51 : vector<16x128xbf16> to vector<16x128xf32>
    %cst_24 = arith.constant dense<0.000000e+00> : vector<2x128xf32>
    %53 = tpu.matmul %0, %52, %cst_24 {dimension_numbers = #tpu.dot_dimension_numbers<[1], [0], [0], [1], [0, 0, 1, 1], [], []>, precision = #tpu.contract_precision<fp32>} : vector<2x16xf32>, vector<16x128xf32>, vector<2x128xf32> -> vector<2x128xf32>
    %c656 = arith.constant 656 : index
    %c0_25 = arith.constant 0 : index
    %54 = vector.load %arg2[%c656, %c0_25] : memref<1104x128xbf16, #tpu.memory_space<vmem>>, vector<1x128xbf16>
    %55 = arith.extf %54 : vector<1x128xbf16> to vector<1x128xf32>
    %56 = vector.broadcast %55 : vector<1x128xf32> to vector<2x128xf32>
    %57 = arith.addf %53, %56 : vector<2x128xf32>
    %cst_26 = arith.constant 0.000000e+00 : f32
    %58 = vector.broadcast %cst_26 : f32 to vector<2x128xf32>
    %59 = arith.maximumf %57, %58 : vector<2x128xf32>
    %c672 = arith.constant 672 : index
    %c0_27 = arith.constant 0 : index
    %60 = vector.load %arg2[%c672, %c0_27] : memref<1104x128xbf16, #tpu.memory_space<vmem>>, vector<128x128xbf16>
    %61 = arith.extf %60 : vector<128x128xbf16> to vector<128x128xf32>
    %cst_28 = arith.constant dense<0.000000e+00> : vector<2x128xf32>
    %62 = tpu.matmul %59, %61, %cst_28 {dimension_numbers = #tpu.dot_dimension_numbers<[1], [0], [0], [1], [0, 0, 1, 1], [], []>, precision = #tpu.contract_precision<fp32>} : vector<2x128xf32>, vector<128x128xf32>, vector<2x128xf32> -> vector<2x128xf32>
    %c800 = arith.constant 800 : index
    %c0_29 = arith.constant 0 : index
    %63 = vector.load %arg2[%c800, %c0_29] : memref<1104x128xbf16, #tpu.memory_space<vmem>>, vector<1x128xbf16>
    %64 = arith.extf %63 : vector<1x128xbf16> to vector<1x128xf32>
    %65 = vector.broadcast %64 : vector<1x128xf32> to vector<2x128xf32>
    %66 = arith.addf %62, %65 : vector<2x128xf32>
    %cst_30 = arith.constant 0.000000e+00 : f32
    %67 = vector.broadcast %cst_30 : f32 to vector<2x128xf32>
    %68 = arith.maximumf %66, %67 : vector<2x128xf32>
    %c816 = arith.constant 816 : index
    %c0_31 = arith.constant 0 : index
    %69 = vector.load %arg2[%c816, %c0_31] : memref<1104x128xbf16, #tpu.memory_space<vmem>>, vector<128x128xbf16>
    %70 = arith.extf %69 : vector<128x128xbf16> to vector<128x128xf32>
    %cst_32 = arith.constant dense<0.000000e+00> : vector<2x128xf32>
    %71 = tpu.matmul %68, %70, %cst_32 {dimension_numbers = #tpu.dot_dimension_numbers<[1], [0], [0], [1], [0, 0, 1, 1], [], []>, precision = #tpu.contract_precision<fp32>} : vector<2x128xf32>, vector<128x128xf32>, vector<2x128xf32> -> vector<2x128xf32>
    %c944 = arith.constant 944 : index
    %c0_33 = arith.constant 0 : index
    %72 = vector.load %arg2[%c944, %c0_33] : memref<1104x128xbf16, #tpu.memory_space<vmem>>, vector<1x128xbf16>
    %73 = arith.extf %72 : vector<1x128xbf16> to vector<1x128xf32>
    %74 = vector.broadcast %73 : vector<1x128xf32> to vector<2x128xf32>
    %75 = arith.addf %71, %74 : vector<2x128xf32>
    %76 = tpu.iota {dimensions = array<i32: 0>} : vector<2x128xi32>
    %77 = tpu.iota {dimensions = array<i32: 1>} : vector<2x128xi32>
    %c128_i32 = arith.constant 128 : i32
    %78 = vector.broadcast %c128_i32 : i32 to vector<2x128xi32>
    %79 = arith.muli %76, %78 : vector<2x128xi32>
    %80 = arith.addi %79, %77 : vector<2x128xi32>
    %c-1640531527_i32 = arith.constant -1640531527 : i32
    %81 = vector.broadcast %c-1640531527_i32 : i32 to vector<2x128xi32>
    %82 = arith.muli %80, %81 : vector<2x128xi32>
    %c0_34 = arith.constant 0 : index
    %83 = memref.load %arg0[%c0_34] : memref<1xi32, #tpu.memory_space<smem>>
    %84 = vector.broadcast %83 : i32 to vector<2x128xi32>
    %85 = arith.addi %82, %84 : vector<2x128xi32>
    %c16_i32 = arith.constant 16 : i32
    %86 = vector.broadcast %c16_i32 : i32 to vector<2x128xi32>
    %87 = arith.shrsi %85, %86 : vector<2x128xi32>
    %c65535_i32 = arith.constant 65535 : i32
    %88 = vector.broadcast %c65535_i32 : i32 to vector<2x128xi32>
    %89 = arith.andi %87, %88 : vector<2x128xi32>
    %90 = arith.xori %85, %89 : vector<2x128xi32>
    %c-2048144789_i32 = arith.constant -2048144789 : i32
    %91 = vector.broadcast %c-2048144789_i32 : i32 to vector<2x128xi32>
    %92 = arith.muli %90, %91 : vector<2x128xi32>
    %c13_i32 = arith.constant 13 : i32
    %93 = vector.broadcast %c13_i32 : i32 to vector<2x128xi32>
    %94 = arith.shrsi %92, %93 : vector<2x128xi32>
    %c524287_i32 = arith.constant 524287 : i32
    %95 = vector.broadcast %c524287_i32 : i32 to vector<2x128xi32>
    %96 = arith.andi %94, %95 : vector<2x128xi32>
    %97 = arith.xori %92, %96 : vector<2x128xi32>
    %c-1028477387_i32 = arith.constant -1028477387 : i32
    %98 = vector.broadcast %c-1028477387_i32 : i32 to vector<2x128xi32>
    %99 = arith.muli %97, %98 : vector<2x128xi32>
    %c16_i32_35 = arith.constant 16 : i32
    %100 = vector.broadcast %c16_i32_35 : i32 to vector<2x128xi32>
    %101 = arith.shrsi %99, %100 : vector<2x128xi32>
    %c65535_i32_36 = arith.constant 65535 : i32
    %102 = vector.broadcast %c65535_i32_36 : i32 to vector<2x128xi32>
    %103 = arith.andi %101, %102 : vector<2x128xi32>
    %104 = arith.xori %99, %103 : vector<2x128xi32>
    %c8388607_i32 = arith.constant 8388607 : i32
    %105 = vector.broadcast %c8388607_i32 : i32 to vector<2x128xi32>
    %106 = arith.andi %104, %105 : vector<2x128xi32>
    %107 = arith.sitofp %106 : vector<2x128xi32> to vector<2x128xf32>
    %cst_37 = arith.constant 1.1920929E-7 : f32
    %108 = vector.broadcast %cst_37 : f32 to vector<2x128xf32>
    %109 = arith.mulf %107, %108 : vector<2x128xf32>
    %cst_38 = arith.constant 0.000000e+00 : f32
    %110 = vector.broadcast %cst_38 : f32 to vector<2x128xf32>
    %111 = arith.subf %110, %50 : vector<2x128xf32>
    %112 = math.exp %111 : vector<2x128xf32>
    %cst_39 = arith.constant 1.000000e+00 : f32
    %113 = vector.broadcast %cst_39 : f32 to vector<2x128xf32>
    %114 = arith.addf %113, %112 : vector<2x128xf32>
    %cst_40 = arith.constant 1.000000e+00 : f32
    %115 = vector.broadcast %cst_40 : f32 to vector<2x128xf32>
    %116 = arith.divf %115, %114 : vector<2x128xf32>
    %117 = arith.cmpf olt, %109, %116 : vector<2x128xf32>
    %118 = arith.extui %117 : vector<2x128xi1> to vector<2x128xi32>
    %119 = arith.sitofp %118 : vector<2x128xi32> to vector<2x128xf32>
    %120 = arith.mulf %25, %119 : vector<2x128xf32>
    %c960 = arith.constant 960 : index
    %c0_41 = arith.constant 0 : index
    %121 = vector.load %arg2[%c960, %c0_41] : memref<1104x128xbf16, #tpu.memory_space<vmem>>, vector<16x128xbf16>
    %122 = arith.extf %121 : vector<16x128xbf16> to vector<16x128xf32>
    %cst_42 = arith.constant dense<0.000000e+00> : vector<2x128xf32>
    %123 = tpu.matmul %0, %122, %cst_42 {dimension_numbers = #tpu.dot_dimension_numbers<[1], [0], [0], [1], [0, 0, 1, 1], [], []>, precision = #tpu.contract_precision<fp32>} : vector<2x16xf32>, vector<16x128xf32>, vector<2x128xf32> -> vector<2x128xf32>
    %124 = arith.mulf %120, %123 : vector<2x128xf32>
    %c976 = arith.constant 976 : index
    %c0_43 = arith.constant 0 : index
    %125 = vector.load %arg2[%c976, %c0_43] : memref<1104x128xbf16, #tpu.memory_space<vmem>>, vector<128x128xbf16>
    %126 = arith.extf %125 : vector<128x128xbf16> to vector<128x128xf32>
    %cst_44 = arith.constant dense<0.000000e+00> : vector<2x128xf32>
    %127 = tpu.matmul %124, %126, %cst_44 {dimension_numbers = #tpu.dot_dimension_numbers<[1], [0], [0], [1], [0, 0, 1, 1], [], []>, precision = #tpu.contract_precision<fp32>} : vector<2x128xf32>, vector<128x128xf32>, vector<2x128xf32> -> vector<2x128xf32>
    %128 = arith.addf %120, %127 : vector<2x128xf32>
    %129 = arith.addf %128, %75 : vector<2x128xf32>
    %c0_45 = arith.constant 0 : index
    %c0_46 = arith.constant 0 : index
    %130 = vector.load %arg3[%c0_45, %c0_46] : memref<2x128xf32, #tpu.memory_space<vmem>>, vector<2x128xf32>
    tpu.vector_store %arg3[%c0_45, %c0_46], %129 {strides = array<i32>} : memref<2x128xf32, #tpu.memory_space<vmem>>, vector<2x128xf32>,
    return
  }
}

</mosaic_0001>

<llo_original>
// kernel: tpu_custom_call.1
$region0: #{tpu_custom_call.1}
  #allocation0 [shape = 'u32[]', space=smem, size = 0x4, offset = 0x4, fixed_abs, tag = 'smem constant byte address 0x4 - core index']
  #allocation1 [shape = 'u32[72,128]{1,0:T(1,128)}', space=vmem, size = 0x9000, scoped, tag = 'internal scratch']
  #allocation2 [shape = 's32[1]{0:T(128)S(6)}', space=smem, size = 0x200, scoped, tag = 'scoped memory for tpu_custom_call.1']
  %s0 = inlined_call_operand.<no memory space> [shape: s32[1], index: 0, kind: input, shape index: {}]
  %s1 = inlined_call_operand.vmem [shape: f32[2,16], index: 1, kind: input, shape index: {}]
  %s2 = inlined_call_operand.hbm [shape: bf16[1104,128], index: 2, kind: input, shape index: {}]
  %s3 = inlined_call_operand.hbm [shape: f32[2,128], index: 3, kind: output, shape index: {}]
  %s4 = sld [smem:[#allocation0]]
  $region26: #{tpu_custom_call.1} parent=0
    _
  %s6 = ssub.s32 1, %s4
  %s7 = scalar_select 0, %s6, %s4
  %8 = sst [smem:[#allocation2]] %s0
  $region1: #{tpu_custom_call.1} parent=0
    #allocation3 [shape = 'u8[282624]{0}', space=vmem, size = 0x45000, scoped, tag = 'input window, operand 2, single buffered']
    #allocation4 [shape = 's32[1]{0}', space=sflag, size = 0x4, scoped, tag = 'scoped memory for tpu_custom_call.1']
    #allocation5 [shape = 's32[1]{0}', space=sflag, size = 0x4, scoped, tag = 'scoped memory for tpu_custom_call.1']
    #allocation6 [shape = 'u8[1024]{0}', space=vmem, size = 0x400, scoped, tag = 'output window, operand 0, single buffered']
    %9 = vsyncpa [#allocation4], 0
    %10 = vsyncpa [#allocation5], 0
    // Predicated region
    $region2: #{tpu_custom_call.1} parent=1 // pred_check
      _
    $region3: #{tpu_custom_call.1} parent=1 // pred_check_branch
      %12 = sbr.rel (0) target = $region5
    $region4: #{tpu_custom_call.1} parent=1 // pred_region
      _
    $region5: #{tpu_custom_call.1} parent=1 // pred_fallthru
      _
    // Predicated region
    $region6: #{tpu_custom_call.1} parent=1 // pred_check
      _
    $region7: #{tpu_custom_call.1} parent=1 // pred_check_branch
      %14 = sbr.rel (0) target = $region9
    $region8: #{tpu_custom_call.1} parent=1 // pred_region
      _
    $region9: #{tpu_custom_call.1} parent=1 // pred_fallthru
      _
    // Predicated region
    $region10: #{tpu_custom_call.1} parent=1 // pred_check
      _
    $region11: #{tpu_custom_call.1} parent=1 // pred_check_branch
      %16 = sbr.rel (0) target = $region13
    $region12: #{tpu_custom_call.1} parent=1 // pred_region
      %18 = vsyncadd [#allocation4], 0
      %s19 = sshll.u32 %s2, 4
      %s20 = int_to_ptr.hbm [resolvable:$true] %s19
      %s21 = sshll.u32 [#allocation3], 4
      %s22 = int_to_ptr.vmem [resolvable:$true] %s21
      %27 = dma.hbm_to_vmem [thread:$0]  %s20, 8832, %s22, [#allocation4], 64, 64, 4
    $region13: #{tpu_custom_call.1} parent=1 // pred_fallthru
      _
    // Predicated region
    $region14: #{tpu_custom_call.1} parent=1 // pred_check
      _
    $region15: #{tpu_custom_call.1} parent=1 // pred_check_branch
      %29 = sbr.rel (0) target = $region17
    $region16: #{tpu_custom_call.1} parent=1 // pred_region
      %31 = dma.done [#allocation4], 8832
    $region17: #{tpu_custom_call.1} parent=1 // pred_fallthru
      _
    %v32 = vld [vmem:[%s1] sm:$0x3]
    %v33 = vld [vmem:[#allocation3] sm:$0xf]
    %v34 = vld [vmem:[#allocation3 + $0x4] sm:$0xf]
    %v35 = vunpack.c.l.bf16 %v33
    %v36 = vunpack.c.l.bf16 %v34
    %v37 = vld [vmem:[#allocation3 + $0x8] sm:$0x1]
    %v38 = vunpack.c.l.bf16 %v37
    %v39 = vperm.slane %v38, 0
    %vm40 = vcmask 130048
    %v42 = vsel %vm40, %v32, 0
    %44 = vmatpush.msra.mxu0 0.0
    %45 = vmatpush.msra.mxu0 0.0
    %46 = vmatpush.msra.mxu0 0.0
    %47 = vmatpush.msra.mxu0 0.0
    %48 = vmatpush.msra.mxu0 0.0
    %49 = vmatpush.msra.mxu0 0.0
    %50 = vmatpush.msra.mxu0 0.0
    %51 = vmatpush.msra.mxu0 0.0
    %52 = vmatpush.msra.mxu0 0.0
    %53 = vmatpush.msra.mxu0 0.0
    %54 = vmatpush.msra.mxu0 0.0
    %55 = vmatpush.msra.mxu0 0.0
    %56 = vmatpush.msra.mxu0 0.0
    %57 = vmatpush.msra.mxu0 0.0
    %58 = vmatpush.msra.mxu0 %v36
    %59 = vmatpush.msra.mxu0 %v35
    %v60 = vand.u32 %v42, 4294901760
    %v61 = vsub.f32 %v42, %v60
    %v62 = vand.u32 %v61, 4294901760
    %v63 = vsub.f32 %v61, %v62
    %v64 = vand.u32 %v63, 4294901760
    %65 = vmatmul.f32.gmra.mxu0 %v64
    %v66 = vpop.f32.mrf.mxu0
    %v67 = vadd.f32 %v39, %v66
    %68 = vdwg.mxu0
    %69 = vmatpush.msra.mxu0 0.0
    %70 = vmatpush.msra.mxu0 0.0
    %71 = vmatpush.msra.mxu0 0.0
    %72 = vmatpush.msra.mxu0 0.0
    %73 = vmatpush.msra.mxu0 0.0
    %74 = vmatpush.msra.mxu0 0.0
    %75 = vmatpush.msra.mxu0 0.0
    %76 = vmatpush.msra.mxu0 0.0
    %77 = vmatpush.msra.mxu0 0.0
    %78 = vmatpush.msra.mxu0 0.0
    %79 = vmatpush.msra.mxu0 0.0
    %80 = vmatpush.msra.mxu0 0.0
    %81 = vmatpush.msra.mxu0 0.0
    %82 = vmatpush.msra.mxu0 0.0
    %v83 = vsub.f32 %v36, %v36
    %v84 = vand.u32 %v83, 4294901760
    %v85 = vsub.f32 %v83, %v84
    %v86 = vand.u32 %v85, 4294901760
    %87 = vmatpush.msra.mxu0 %v86
    %v88 = vsub.f32 %v35, %v35
    %v89 = vand.u32 %v88, 4294901760
    %v90 = vsub.f32 %v88, %v89
    %v91 = vand.u32 %v90, 4294901760
    %92 = vmatpush.msra.mxu0 %v91
    %v93 = vand.u32 %v42, 4294901760
    %94 = vmatmul.f32.gmra.mxu0 %v93
    %v95 = vpop.f32.mrf.mxu0
    %v96 = vadd.f32 %v67, %v95
    %97 = vdwg.mxu0
    %98 = vmatpush.msra.mxu0 0.0
    %99 = vmatpush.msra.mxu0 0.0
    %100 = vmatpush.msra.mxu0 0.0
    %101 = vmatpush.msra.mxu0 0.0
    %102 = vmatpush.msra.mxu0 0.0
    %103 = vmatpush.msra.mxu0 0.0
    %104 = vmatpush.msra.mxu0 0.0
    %105 = vmatpush.msra.mxu0 0.0
    %106 = vmatpush.msra.mxu0 0.0
    %107 = vmatpush.msra.mxu0 0.0
    %108 = vmatpush.msra.mxu0 0.0
    %109 = vmatpush.msra.mxu0 0.0
    %110 = vmatpush.msra.mxu0 0.0
    %111 = vmatpush.msra.mxu0 0.0
    %v112 = vsub.f32 %v36, %v36
    %113 = vmatpush.msra.mxu0 %v112
    %v114 = vsub.f32 %v35, %v35
    %115 = vmatpush.msra.mxu0 %v114
    %v116 = vand.u32 %v42, 4294901760
    %v117 = vsub.f32 %v42, %v116
    %118 = vmatmul.f32.gmra.mxu0 %v117
    %v119 = vpop.f32.mrf.mxu0
    %v120 = vadd.f32 %v96, %v119
    %121 = vdwg.mxu0
    %122 = vmatpush.msra.mxu0 0.0
    %123 = vmatpush.msra.mxu0 0.0
    %124 = vmatpush.msra.mxu0 0.0
    %125 = vmatpush.msra.mxu0 0.0
    %126 = vmatpush.msra.mxu0 0.0
    %127 = vmatpush.msra.mxu0 0.0
    %128 = vmatpush.msra.mxu0 0.0
    %129 = vmatpush.msra.mxu0 0.0
    %130 = vmatpush.msra.mxu0 0.0
    %131 = vmatpush.msra.mxu0 0.0
    %132 = vmatpush.msra.mxu0 0.0
    %133 = vmatpush.msra.mxu0 0.0
    %134 = vmatpush.msra.mxu0 0.0
    %135 = vmatpush.msra.mxu0 0.0
    %136 = vmatpush.msra.mxu0 %v36
    %137 = vmatpush.msra.mxu0 %v35
    %v138 = vand.u32 %v42, 4294901760
    %v139 = vsub.f32 %v42, %v138
    %v140 = vand.u32 %v139, 4294901760
    %141 = vmatmul.f32.gmra.mxu0 %v140
    %v142 = vpop.f32.mrf.mxu0
    %v143 = vadd.f32 %v120, %v142
    %144 = vdwg.mxu0
    %145 = vmatpush.msra.mxu0 0.0
    %146 = vmatpush.msra.mxu0 0.0
    %147 = vmatpush.msra.mxu0 0.0
    %148 = vmatpush.msra.mxu0 0.0
    %149 = vmatpush.msra.mxu0 0.0
    %150 = vmatpush.msra.mxu0 0.0
    %151 = vmatpush.msra.mxu0 0.0
    %152 = vmatpush.msra.mxu0 0.0
    %153 = vmatpush.msra.mxu0 0.0
    %154 = vmatpush.msra.mxu0 0.0
    %155 = vmatpush.msra.mxu0 0.0
    %156 = vmatpush.msra.mxu0 0.0
    %157 = vmatpush.msra.mxu0 0.0
    %158 = vmatpush.msra.mxu0 0.0
    %v159 = vsub.f32 %v36, %v36
    %v160 = vand.u32 %v159, 4294901760
    %161 = vmatpush.msra.mxu0 %v160
    %v162 = vsub.f32 %v35, %v35
    %v163 = vand.u32 %v162, 4294901760
    %164 = vmatpush.msra.mxu0 %v163
    %v165 = vand.u32 %v42, 4294901760
    %166 = vmatmul.f32.gmra.mxu0 %v165
    %v167 = vpop.f32.mrf.mxu0
    %v168 = vadd.f32 %v143, %v167
    %169 = vdwg.mxu0
    %170 = vmatpush.msra.mxu0 0.0
    %171 = vmatpush.msra.mxu0 0.0
    %172 = vmatpush.msra.mxu0 0.0
    %173 = vmatpush.msra.mxu0 0.0
    %174 = vmatpush.msra.mxu0 0.0
    %175 = vmatpush.msra.mxu0 0.0
    %176 = vmatpush.msra.mxu0 0.0
    %177 = vmatpush.msra.mxu0 0.0
    %178 = vmatpush.msra.mxu0 0.0
    %179 = vmatpush.msra.mxu0 0.0
    %180 = vmatpush.msra.mxu0 0.0
    %181 = vmatpush.msra.mxu0 0.0
    %182 = vmatpush.msra.mxu0 0.0
    %183 = vmatpush.msra.mxu0 0.0
    %184 = vmatpush.msra.mxu0 %v36
    %185 = vmatpush.msra.mxu0 %v35
    %v186 = vand.u32 %v42, 4294901760
    %187 = vmatmul.f32.gmra.mxu0 %v186
    %v188 = vpop.f32.mrf.mxu0
    %v189 = vadd.f32 %v168, %v188
    %190 = vdwg.mxu0
    %v191 = vmax.f32 %v189, 0.0
    %v192 = vld [vmem:[#allocation3 + $0x10] sm:$0xf]
    %v193 = vld [vmem:[#allocation3 + $0x14] sm:$0xf]
    %v194 = vld [vmem:[#allocation3 + $0x18] sm:$0xf]
    %v195 = vld [vmem:[#allocation3 + $0x1c] sm:$0xf]
    %v196 = vld [vmem:[#allocation3 + $0x20] sm:$0xf]
    %v197 = vld [vmem:[#allocation3 + $0x24] sm:$0xf]
    %v198 = vld [vmem:[#allocation3 + $0x28] sm:$0xf]
    %v199 = vld [vmem:[#allocation3 + $0x2c] sm:$0xf]
    %v200 = vld [vmem:[#allocation3 + $0x30] sm:$0xf]
    %v201 = vld [vmem:[#allocation3 + $0x34] sm:$0xf]
    %v202 = vld [vmem:[#allocation3 + $0x38] sm:$0xf]
    %v203 = vld [vmem:[#allocation3 + $0x3c] sm:$0xf]
    %v204 = vld [vmem:[#allocation3 + $0x40] sm:$0xf]
    %v205 = vld [vmem:[#allocation3 + $0x44] sm:$0xf]
    %v206 = vld [vmem:[#allocation3 + $0x48] sm:$0xf]
    %v207 = vld [vmem:[#allocation3 + $0x4c] sm:$0xf]
    %v208 = vunpack.c.l.bf16 %v192
    %v209 = vunpack.c.l.bf16 %v193
    %v210 = vunpack.c.l.bf16 %v194
    %v211 = vunpack.c.l.bf16 %v195
    %v212 = vunpack.c.l.bf16 %v196
    %v213 = vunpack.c.l.bf16 %v197
    %v214 = vunpack.c.l.bf16 %v198
    %v215 = vunpack.c.l.bf16 %v199
    %v216 = vunpack.c.l.bf16 %v200
    %v217 = vunpack.c.l.bf16 %v201
    %v218 = vunpack.c.l.bf16 %v202
    %v219 = vunpack.c.l.bf16 %v203
    %v220 = vunpack.c.l.bf16 %v204
    %v221 = vunpack.c.l.bf16 %v205
    %v222 = vunpack.c.l.bf16 %v206
    %v223 = vunpack.c.l.bf16 %v207
    %v224 = vld [vmem:[#allocation3 + $0x50] sm:$0x1]
    %v225 = vunpack.c.l.bf16 %v224
    %v226 = vperm.slane %v225, 0
    %227 = vmatpush.msra.mxu0 %v223
    %228 = vmatpush.msra.mxu0 %v222
    %229 = vmatpush.msra.mxu0 %v221
    %230 = vmatpush.msra.mxu0 %v220
    %231 = vmatpush.msra.mxu0 %v219
    %232 = vmatpush.msra.mxu0 %v218
    %233 = vmatpush.msra.mxu0 %v217
    %234 = vmatpush.msra.mxu0 %v216
    %235 = vmatpush.msra.mxu0 %v215
    %236 = vmatpush.msra.mxu0 %v214
    %237 = vmatpush.msra.mxu0 %v213
    %238 = vmatpush.msra.mxu0 %v212
    %239 = vmatpush.msra.mxu0 %v211
    %240 = vmatpush.msra.mxu0 %v210
    %241 = vmatpush.msra.mxu0 %v209
    %242 = vmatpush.msra.mxu0 %v208
    %v243 = vand.u32 %v191, 4294901760
    %v244 = vsub.f32 %v191, %v243
    %v245 = vand.u32 %v244, 4294901760
    %v246 = vsub.f32 %v244, %v245
    %v247 = vand.u32 %v246, 4294901760
    %248 = vmatmul.f32.gmra.mxu0 %v247
    %v249 = vpop.f32.mrf.mxu0
    %v250 = vadd.f32 %v226, %v249
    %251 = vdwg.mxu0
    %v252 = vsub.f32 %v223, %v223
    %v253 = vand.u32 %v252, 4294901760
    %v254 = vsub.f32 %v252, %v253
    %v255 = vand.u32 %v254, 4294901760
    %256 = vmatpush.msra.mxu0 %v255
    %v257 = vsub.f32 %v222, %v222
    %v258 = vand.u32 %v257, 4294901760
    %v259 = vsub.f32 %v257, %v258
    %v260 = vand.u32 %v259, 4294901760
    %261 = vmatpush.msra.mxu0 %v260
    %v262 = vsub.f32 %v221, %v221
    %v263 = vand.u32 %v262, 4294901760
    %v264 = vsub.f32 %v262, %v263
    %v265 = vand.u32 %v264, 4294901760
    %266 = vmatpush.msra.mxu0 %v265
    %v267 = vsub.f32 %v220, %v220
    %v268 = vand.u32 %v267, 4294901760
    %v269 = vsub.f32 %v267, %v268
    %v270 = vand.u32 %v269, 4294901760
    %271 = vmatpush.msra.mxu0 %v270
    %v272 = vsub.f32 %v219, %v219
    %v273 = vand.u32 %v272, 4294901760
    %v274 = vsub.f32 %v272, %v273
    %v275 = vand.u32 %v274, 4294901760
    %276 = vmatpush.msra.mxu0 %v275
    %v277 = vsub.f32 %v218, %v218
    %v278 = vand.u32 %v277, 4294901760
    %v279 = vsub.f32 %v277, %v278
    %v280 = vand.u32 %v279, 4294901760
    %281 = vmatpush.msra.mxu0 %v280
    %v282 = vsub.f32 %v217, %v217
    %v283 = vand.u32 %v282, 4294901760
    %v284 = vsub.f32 %v282, %v283
    %v285 = vand.u32 %v284, 4294901760
    %286 = vmatpush.msra.mxu0 %v285
    %v287 = vsub.f32 %v216, %v216
    %v288 = vand.u32 %v287, 4294901760
    %v289 = vsub.f32 %v287, %v288
    %v290 = vand.u32 %v289, 4294901760
    %291 = vmatpush.msra.mxu0 %v290
    %v292 = vsub.f32 %v215, %v215
    %v293 = vand.u32 %v292, 4294901760
    %v294 = vsub.f32 %v292, %v293
    %v295 = vand.u32 %v294, 4294901760
    %296 = vmatpush.msra.mxu0 %v295
    %v297 = vsub.f32 %v214, %v214
    %v298 = vand.u32 %v297, 4294901760
    %v299 = vsub.f32 %v297, %v298
    %v300 = vand.u32 %v299, 4294901760
    %301 = vmatpush.msra.mxu0 %v300
    %v302 = vsub.f32 %v213, %v213
    %v303 = vand.u32 %v302, 4294901760
    %v304 = vsub.f32 %v302, %v303
    %v305 = vand.u32 %v304, 4294901760
    %306 = vmatpush.msra.mxu0 %v305
    %v307 = vsub.f32 %v212, %v212
    %v308 = vand.u32 %v307, 4294901760
    %v309 = vsub.f32 %v307, %v308
    %v310 = vand.u32 %v309, 4294901760
    %311 = vmatpush.msra.mxu0 %v310
    %v312 = vsub.f32 %v211, %v211
    %v313 = vand.u32 %v312, 4294901760
    %v314 = vsub.f32 %v312, %v313
    %v315 = vand.u32 %v314, 4294901760
    %316 = vmatpush.msra.mxu0 %v315
    %v317 = vsub.f32 %v210, %v210
    %v318 = vand.u32 %v317, 4294901760
    %v319 = vsub.f32 %v317, %v318
    %v320 = vand.u32 %v319, 4294901760
    %321 = vmatpush.msra.mxu0 %v320
    %v322 = vsub.f32 %v209, %v209
    %v323 = vand.u32 %v322, 4294901760
    %v324 = vsub.f32 %v322, %v323
    %v325 = vand.u32 %v324, 4294901760
    %326 = vmatpush.msra.mxu0 %v325
    %v327 = vsub.f32 %v208, %v208
    %v328 = vand.u32 %v327, 4294901760
    %v329 = vsub.f32 %v327, %v328
    %v330 = vand.u32 %v329, 4294901760
    %331 = vmatpush.msra.mxu0 %v330
    %v332 = vand.u32 %v191, 4294901760
    %333 = vmatmul.f32.gmra.mxu0 %v332
    %v334 = vpop.f32.mrf.mxu0
    %v335 = vadd.f32 %v250, %v334
    %336 = vdwg.mxu0
    %v337 = vsub.f32 %v223, %v223
    %338 = vmatpush.msra.mxu0 %v337
    %v339 = vsub.f32 %v222, %v222
    %340 = vmatpush.msra.mxu0 %v339
    %v341 = vsub.f32 %v221, %v221
    %342 = vmatpush.msra.mxu0 %v341
    %v343 = vsub.f32 %v220, %v220
    %344 = vmatpush.msra.mxu0 %v343
    %v345 = vsub.f32 %v219, %v219
    %346 = vmatpush.msra.mxu0 %v345
    %v347 = vsub.f32 %v218, %v218
    %348 = vmatpush.msra.mxu0 %v347
    %v349 = vsub.f32 %v217, %v217
    %350 = vmatpush.msra.mxu0 %v349
    %v351 = vsub.f32 %v216, %v216
    %352 = vmatpush.msra.mxu0 %v351
    %v353 = vsub.f32 %v215, %v215
    %354 = vmatpush.msra.mxu0 %v353
    %v355 = vsub.f32 %v214, %v214
    %356 = vmatpush.msra.mxu0 %v355
    %v357 = vsub.f32 %v213, %v213
    %358 = vmatpush.msra.mxu0 %v357
    %v359 = vsub.f32 %v212, %v212
    %360 = vmatpush.msra.mxu0 %v359
    %v361 = vsub.f32 %v211, %v211
    %362 = vmatpush.msra.mxu0 %v361
    %v363 = vsub.f32 %v210, %v210
    %364 = vmatpush.msra.mxu0 %v363
    %v365 = vsub.f32 %v209, %v209
    %366 = vmatpush.msra.mxu0 %v365
    %v367 = vsub.f32 %v208, %v208
    %368 = vmatpush.msra.mxu0 %v367
    %v369 = vand.u32 %v191, 4294901760
    %v370 = vsub.f32 %v191, %v369
    %371 = vmatmul.f32.gmra.mxu0 %v370
    %v372 = vpop.f32.mrf.mxu0
    %v373 = vadd.f32 %v335, %v372
    %374 = vdwg.mxu0
    %375 = vmatpush.msra.mxu0 %v223
    %376 = vmatpush.msra.mxu0 %v222
    %377 = vmatpush.msra.mxu0 %v221
    %378 = vmatpush.msra.mxu0 %v220
    %379 = vmatpush.msra.mxu0 %v219
    %380 = vmatpush.msra.mxu0 %v218
    %381 = vmatpush.msra.mxu0 %v217
    %382 = vmatpush.msra.mxu0 %v216
    %383 = vmatpush.msra.mxu0 %v215
    %384 = vmatpush.msra.mxu0 %v214
    %385 = vmatpush.msra.mxu0 %v213
    %386 = vmatpush.msra.mxu0 %v212
    %387 = vmatpush.msra.mxu0 %v211
    %388 = vmatpush.msra.mxu0 %v210
    %389 = vmatpush.msra.mxu0 %v209
    %390 = vmatpush.msra.mxu0 %v208
    %v391 = vand.u32 %v191, 4294901760
    %v392 = vsub.f32 %v191, %v391
    %v393 = vand.u32 %v392, 4294901760
    %394 = vmatmul.f32.gmra.mxu0 %v393
    %v395 = vpop.f32.mrf.mxu0
    %v396 = vadd.f32 %v373, %v395
    %397 = vdwg.mxu0
    %v398 = vsub.f32 %v223, %v223
    %v399 = vand.u32 %v398, 4294901760
    %400 = vmatpush.msra.mxu0 %v399
    %v401 = vsub.f32 %v222, %v222
    %v402 = vand.u32 %v401, 4294901760
    %403 = vmatpush.msra.mxu0 %v402
    %v404 = vsub.f32 %v221, %v221
    %v405 = vand.u32 %v404, 4294901760
    %406 = vmatpush.msra.mxu0 %v405
    %v407 = vsub.f32 %v220, %v220
    %v408 = vand.u32 %v407, 4294901760
    %409 = vmatpush.msra.mxu0 %v408
    %v410 = vsub.f32 %v219, %v219
    %v411 = vand.u32 %v410, 4294901760
    %412 = vmatpush.msra.mxu0 %v411
    %v413 = vsub.f32 %v218, %v218
    %v414 = vand.u32 %v413, 4294901760
    %415 = vmatpush.msra.mxu0 %v414
    %v416 = vsub.f32 %v217, %v217
    %v417 = vand.u32 %v416, 4294901760
    %418 = vmatpush.msra.mxu0 %v417
    %v419 = vsub.f32 %v216, %v216
    %v420 = vand.u32 %v419, 4294901760
    %421 = vmatpush.msra.mxu0 %v420
    %v422 = vsub.f32 %v215, %v215
    %v423 = vand.u32 %v422, 4294901760
    %424 = vmatpush.msra.mxu0 %v423
    %v425 = vsub.f32 %v214, %v214
    %v426 = vand.u32 %v425, 4294901760
    %427 = vmatpush.msra.mxu0 %v426
    %v428 = vsub.f32 %v213, %v213
    %v429 = vand.u32 %v428, 4294901760
    %430 = vmatpush.msra.mxu0 %v429
    %v431 = vsub.f32 %v212, %v212
    %v432 = vand.u32 %v431, 4294901760
    %433 = vmatpush.msra.mxu0 %v432
    %v434 = vsub.f32 %v211, %v211
    %v435 = vand.u32 %v434, 4294901760
    %436 = vmatpush.msra.mxu0 %v435
    %v437 = vsub.f32 %v210, %v210
    %v438 = vand.u32 %v437, 4294901760
    %439 = vmatpush.msra.mxu0 %v438
    %v440 = vsub.f32 %v209, %v209
    %v441 = vand.u32 %v440, 4294901760
    %442 = vmatpush.msra.mxu0 %v441
    %v443 = vsub.f32 %v208, %v208
    %v444 = vand.u32 %v443, 4294901760
    %445 = vmatpush.msra.mxu0 %v444
    %v446 = vand.u32 %v191, 4294901760
    %447 = vmatmul.f32.gmra.mxu0 %v446
    %v448 = vpop.f32.mrf.mxu0
    %v449 = vadd.f32 %v396, %v448
    %450 = vdwg.mxu0
    %451 = vmatpush.msra.mxu0 %v223
    %452 = vmatpush.msra.mxu0 %v222
    %453 = vmatpush.msra.mxu0 %v221
    %454 = vmatpush.msra.mxu0 %v220
    %455 = vmatpush.msra.mxu0 %v219
    %456 = vmatpush.msra.mxu0 %v218
    %457 = vmatpush.msra.mxu0 %v217
    %458 = vmatpush.msra.mxu0 %v216
    %459 = vmatpush.msra.mxu0 %v215
    %460 = vmatpush.msra.mxu0 %v214
    %461 = vmatpush.msra.mxu0 %v213
    %462 = vmatpush.msra.mxu0 %v212
    %463 = vmatpush.msra.mxu0 %v211
    %464 = vmatpush.msra.mxu0 %v210
    %465 = vmatpush.msra.mxu0 %v209
    %466 = vmatpush.msra.mxu0 %v208
    %v467 = vand.u32 %v191, 4294901760
    %468 = vmatmul.f32.gmra.mxu0 %v467
    %v469 = vpop.f32.mrf.mxu0
    %v470 = vadd.f32 %v449, %v469
    %471 = vdwg.mxu0
    %v472 = vmax.f32 %v470, 0.0
    %v473 = vld [vmem:[#allocation3 + $0x58] sm:$0xf]
    %v474 = vld [vmem:[#allocation3 + $0x5c] sm:$0xf]
    %v475 = vld [vmem:[#allocation3 + $0x60] sm:$0xf]
    %v476 = vld [vmem:[#allocation3 + $0x64] sm:$0xf]
    %v477 = vld [vmem:[#allocation3 + $0x68] sm:$0xf]
    %v478 = vld [vmem:[#allocation3 + $0x6c] sm:$0xf]
    %v479 = vld [vmem:[#allocation3 + $0x70] sm:$0xf]
    %v480 = vld [vmem:[#allocation3 + $0x74] sm:$0xf]
    %v481 = vld [vmem:[#allocation3 + $0x78] sm:$0xf]
    %v482 = vld [vmem:[#allocation3 + $0x7c] sm:$0xf]
    %v483 = vld [vmem:[#allocation3 + $0x80] sm:$0xf]
    %v484 = vld [vmem:[#allocation3 + $0x84] sm:$0xf]
    %v485 = vld [vmem:[#allocation3 + $0x88] sm:$0xf]
    %v486 = vld [vmem:[#allocation3 + $0x8c] sm:$0xf]
    %v487 = vld [vmem:[#allocation3 + $0x90] sm:$0xf]
    %v488 = vld [vmem:[#allocation3 + $0x94] sm:$0xf]
    %v489 = vunpack.c.l.bf16 %v473
    %v490 = vunpack.c.l.bf16 %v474
    %v491 = vunpack.c.l.bf16 %v475
    %v492 = vunpack.c.l.bf16 %v476
    %v493 = vunpack.c.l.bf16 %v477
    %v494 = vunpack.c.l.bf16 %v478
    %v495 = vunpack.c.l.bf16 %v479
    %v496 = vunpack.c.l.bf16 %v480
    %v497 = vunpack.c.l.bf16 %v481
    %v498 = vunpack.c.l.bf16 %v482
    %v499 = vunpack.c.l.bf16 %v483
    %v500 = vunpack.c.l.bf16 %v484
    %v501 = vunpack.c.l.bf16 %v485
    %v502 = vunpack.c.l.bf16 %v486
    %v503 = vunpack.c.l.bf16 %v487
    %v504 = vunpack.c.l.bf16 %v488
    %v505 = vld [vmem:[#allocation3 + $0x98] sm:$0x1]
    %v506 = vunpack.c.l.bf16 %v505
    %v507 = vperm.slane %v506, 0
    %508 = vmatpush.msra.mxu0 %v504
    %509 = vmatpush.msra.mxu0 %v503
    %510 = vmatpush.msra.mxu0 %v502
    %511 = vmatpush.msra.mxu0 %v501
    %512 = vmatpush.msra.mxu0 %v500
    %513 = vmatpush.msra.mxu0 %v499
    %514 = vmatpush.msra.mxu0 %v498
    %515 = vmatpush.msra.mxu0 %v497
    %516 = vmatpush.msra.mxu0 %v496
    %517 = vmatpush.msra.mxu0 %v495
    %518 = vmatpush.msra.mxu0 %v494
    %519 = vmatpush.msra.mxu0 %v493
    %520 = vmatpush.msra.mxu0 %v492
    %521 = vmatpush.msra.mxu0 %v491
    %522 = vmatpush.msra.mxu0 %v490
    %523 = vmatpush.msra.mxu0 %v489
    %v524 = vand.u32 %v472, 4294901760
    %v525 = vsub.f32 %v472, %v524
    %v526 = vand.u32 %v525, 4294901760
    %v527 = vsub.f32 %v525, %v526
    %v528 = vand.u32 %v527, 4294901760
    %529 = vmatmul.f32.gmra.mxu0 %v528
    %v530 = vpop.f32.mrf.mxu0
    %v531 = vadd.f32 %v507, %v530
    %532 = vdwg.mxu0
    %v533 = vsub.f32 %v504, %v504
    %v534 = vand.u32 %v533, 4294901760
    %v535 = vsub.f32 %v533, %v534
    %v536 = vand.u32 %v535, 4294901760
    %537 = vmatpush.msra.mxu0 %v536
    %v538 = vsub.f32 %v503, %v503
    %v539 = vand.u32 %v538, 4294901760
    %v540 = vsub.f32 %v538, %v539
    %v541 = vand.u32 %v540, 4294901760
    %542 = vmatpush.msra.mxu0 %v541
    %v543 = vsub.f32 %v502, %v502
    %v544 = vand.u32 %v543, 4294901760
    %v545 = vsub.f32 %v543, %v544
    %v546 = vand.u32 %v545, 4294901760
    %547 = vmatpush.msra.mxu0 %v546
    %v548 = vsub.f32 %v501, %v501
    %v549 = vand.u32 %v548, 4294901760
    %v550 = vsub.f32 %v548, %v549
    %v551 = vand.u32 %v550, 4294901760
    %552 = vmatpush.msra.mxu0 %v551
    %v553 = vsub.f32 %v500, %v500
    %v554 = vand.u32 %v553, 4294901760
    %v555 = vsub.f32 %v553, %v554
    %v556 = vand.u32 %v555, 4294901760
    %557 = vmatpush.msra.mxu0 %v556
    %v558 = vsub.f32 %v499, %v499
    %v559 = vand.u32 %v558, 4294901760
    %v560 = vsub.f32 %v558, %v559
    %v561 = vand.u32 %v560, 4294901760
    %562 = vmatpush.msra.mxu0 %v561
    %v563 = vsub.f32 %v498, %v498
    %v564 = vand.u32 %v563, 4294901760
    %v565 = vsub.f32 %v563, %v564
    %v566 = vand.u32 %v565, 4294901760
    %567 = vmatpush.msra.mxu0 %v566
    %v568 = vsub.f32 %v497, %v497
    %v569 = vand.u32 %v568, 4294901760
    %v570 = vsub.f32 %v568, %v569
    %v571 = vand.u32 %v570, 4294901760
    %572 = vmatpush.msra.mxu0 %v571
    %v573 = vsub.f32 %v496, %v496
    %v574 = vand.u32 %v573, 4294901760
    %v575 = vsub.f32 %v573, %v574
    %v576 = vand.u32 %v575, 4294901760
    %577 = vmatpush.msra.mxu0 %v576
    %v578 = vsub.f32 %v495, %v495
    %v579 = vand.u32 %v578, 4294901760
    %v580 = vsub.f32 %v578, %v579
    %v581 = vand.u32 %v580, 4294901760
    %582 = vmatpush.msra.mxu0 %v581
    %v583 = vsub.f32 %v494, %v494
    %v584 = vand.u32 %v583, 4294901760
    %v585 = vsub.f32 %v583, %v584
    %v586 = vand.u32 %v585, 4294901760
    %587 = vmatpush.msra.mxu0 %v586
    %v588 = vsub.f32 %v493, %v493
    %v589 = vand.u32 %v588, 4294901760
    %v590 = vsub.f32 %v588, %v589
    %v591 = vand.u32 %v590, 4294901760
    %592 = vmatpush.msra.mxu0 %v591
    %v593 = vsub.f32 %v492, %v492
    %v594 = vand.u32 %v593, 4294901760
    %v595 = vsub.f32 %v593, %v594
    %v596 = vand.u32 %v595, 4294901760
    %597 = vmatpush.msra.mxu0 %v596
    %v598 = vsub.f32 %v491, %v491
    %v599 = vand.u32 %v598, 4294901760
    %v600 = vsub.f32 %v598, %v599
    %v601 = vand.u32 %v600, 4294901760
    %602 = vmatpush.msra.mxu0 %v601
    %v603 = vsub.f32 %v490, %v490
    %v604 = vand.u32 %v603, 4294901760
    %v605 = vsub.f32 %v603, %v604
    %v606 = vand.u32 %v605, 4294901760
    %607 = vmatpush.msra.mxu0 %v606
    %v608 = vsub.f32 %v489, %v489
    %v609 = vand.u32 %v608, 4294901760
    %v610 = vsub.f32 %v608, %v609
    %v611 = vand.u32 %v610, 4294901760
    %612 = vmatpush.msra.mxu0 %v611
    %v613 = vand.u32 %v472, 4294901760
    %614 = vmatmul.f32.gmra.mxu0 %v613
    %v615 = vpop.f32.mrf.mxu0
    %v616 = vadd.f32 %v531, %v615
    %617 = vdwg.mxu0
    %v618 = vsub.f32 %v504, %v504
    %619 = vmatpush.msra.mxu0 %v618
    %v620 = vsub.f32 %v503, %v503
    %621 = vmatpush.msra.mxu0 %v620
    %v622 = vsub.f32 %v502, %v502
    %623 = vmatpush.msra.mxu0 %v622
    %v624 = vsub.f32 %v501, %v501
    %625 = vmatpush.msra.mxu0 %v624
    %v626 = vsub.f32 %v500, %v500
    %627 = vmatpush.msra.mxu0 %v626
    %v628 = vsub.f32 %v499, %v499
    %629 = vmatpush.msra.mxu0 %v628
    %v630 = vsub.f32 %v498, %v498
    %631 = vmatpush.msra.mxu0 %v630
    %v632 = vsub.f32 %v497, %v497
    %633 = vmatpush.msra.mxu0 %v632
    %v634 = vsub.f32 %v496, %v496
    %635 = vmatpush.msra.mxu0 %v634
    %v636 = vsub.f32 %v495, %v495
    %637 = vmatpush.msra.mxu0 %v636
    %v638 = vsub.f32 %v494, %v494
    %639 = vmatpush.msra.mxu0 %v638
    %v640 = vsub.f32 %v493, %v493
    %641 = vmatpush.msra.mxu0 %v640
    %v642 = vsub.f32 %v492, %v492
    %643 = vmatpush.msra.mxu0 %v642
    %v644 = vsub.f32 %v491, %v491
    %645 = vmatpush.msra.mxu0 %v644
    %v646 = vsub.f32 %v490, %v490
    %647 = vmatpush.msra.mxu0 %v646
    %v648 = vsub.f32 %v489, %v489
    %649 = vmatpush.msra.mxu0 %v648
    %v650 = vand.u32 %v472, 4294901760
    %v651 = vsub.f32 %v472, %v650
    %652 = vmatmul.f32.gmra.mxu0 %v651
    %v653 = vpop.f32.mrf.mxu0
    %v654 = vadd.f32 %v616, %v653
    %655 = vdwg.mxu0
    %656 = vmatpush.msra.mxu0 %v504
    %657 = vmatpush.msra.mxu0 %v503
    %658 = vmatpush.msra.mxu0 %v502
    %659 = vmatpush.msra.mxu0 %v501
    %660 = vmatpush.msra.mxu0 %v500
    %661 = vmatpush.msra.mxu0 %v499
    %662 = vmatpush.msra.mxu0 %v498
    %663 = vmatpush.msra.mxu0 %v497
    %664 = vmatpush.msra.mxu0 %v496
    %665 = vmatpush.msra.mxu0 %v495
    %666 = vmatpush.msra.mxu0 %v494
    %667 = vmatpush.msra.mxu0 %v493
    %668 = vmatpush.msra.mxu0 %v492
    %669 = vmatpush.msra.mxu0 %v491
    %670 = vmatpush.msra.mxu0 %v490
    %671 = vmatpush.msra.mxu0 %v489
    %v672 = vand.u32 %v472, 4294901760
    %v673 = vsub.f32 %v472, %v672
    %v674 = vand.u32 %v673, 4294901760
    %675 = vmatmul.f32.gmra.mxu0 %v674
    %v676 = vpop.f32.mrf.mxu0
    %v677 = vadd.f32 %v654, %v676
    %678 = vdwg.mxu0
    %v679 = vsub.f32 %v504, %v504
    %v680 = vand.u32 %v679, 4294901760
    %681 = vmatpush.msra.mxu0 %v680
    %v682 = vsub.f32 %v503, %v503
    %v683 = vand.u32 %v682, 4294901760
    %684 = vmatpush.msra.mxu0 %v683
    %v685 = vsub.f32 %v502, %v502
    %v686 = vand.u32 %v685, 4294901760
    %687 = vmatpush.msra.mxu0 %v686
    %v688 = vsub.f32 %v501, %v501
    %v689 = vand.u32 %v688, 4294901760
    %690 = vmatpush.msra.mxu0 %v689
    %v691 = vsub.f32 %v500, %v500
    %v692 = vand.u32 %v691, 4294901760
    %693 = vmatpush.msra.mxu0 %v692
    %v694 = vsub.f32 %v499, %v499
    %v695 = vand.u32 %v694, 4294901760
    %696 = vmatpush.msra.mxu0 %v695
    %v697 = vsub.f32 %v498, %v498
    %v698 = vand.u32 %v697, 4294901760
    %699 = vmatpush.msra.mxu0 %v698
    %v700 = vsub.f32 %v497, %v497
    %v701 = vand.u32 %v700, 4294901760
    %702 = vmatpush.msra.mxu0 %v701
    %v703 = vsub.f32 %v496, %v496
    %v704 = vand.u32 %v703, 4294901760
    %705 = vmatpush.msra.mxu0 %v704
    %v706 = vsub.f32 %v495, %v495
    %v707 = vand.u32 %v706, 4294901760
    %708 = vmatpush.msra.mxu0 %v707
    %v709 = vsub.f32 %v494, %v494
    %v710 = vand.u32 %v709, 4294901760
    %711 = vmatpush.msra.mxu0 %v710
    %v712 = vsub.f32 %v493, %v493
    %v713 = vand.u32 %v712, 4294901760
    %714 = vmatpush.msra.mxu0 %v713
    %v715 = vsub.f32 %v492, %v492
    %v716 = vand.u32 %v715, 4294901760
    %717 = vmatpush.msra.mxu0 %v716
    %v718 = vsub.f32 %v491, %v491
    %v719 = vand.u32 %v718, 4294901760
    %720 = vmatpush.msra.mxu0 %v719
    %v721 = vsub.f32 %v490, %v490
    %v722 = vand.u32 %v721, 4294901760
    %723 = vmatpush.msra.mxu0 %v722
    %v724 = vsub.f32 %v489, %v489
    %v725 = vand.u32 %v724, 4294901760
    %726 = vmatpush.msra.mxu0 %v725
    %v727 = vand.u32 %v472, 4294901760
    %728 = vmatmul.f32.gmra.mxu0 %v727
    %v729 = vpop.f32.mrf.mxu0
    %v730 = vadd.f32 %v677, %v729
    %731 = vdwg.mxu0
    %732 = vmatpush.msra.mxu0 %v504
    %733 = vmatpush.msra.mxu0 %v503
    %734 = vmatpush.msra.mxu0 %v502
    %735 = vmatpush.msra.mxu0 %v501
    %736 = vmatpush.msra.mxu0 %v500
    %737 = vmatpush.msra.mxu0 %v499
    %738 = vmatpush.msra.mxu0 %v498
    %739 = vmatpush.msra.mxu0 %v497
    %740 = vmatpush.msra.mxu0 %v496
    %741 = vmatpush.msra.mxu0 %v495
    %742 = vmatpush.msra.mxu0 %v494
    %743 = vmatpush.msra.mxu0 %v493
    %744 = vmatpush.msra.mxu0 %v492
    %745 = vmatpush.msra.mxu0 %v491
    %746 = vmatpush.msra.mxu0 %v490
    %747 = vmatpush.msra.mxu0 %v489
    %v748 = vand.u32 %v472, 4294901760
    %749 = vmatmul.f32.gmra.mxu0 %v748
    %v750 = vpop.f32.mrf.mxu0
    %v751 = vadd.f32 %v730, %v750
    %752 = vdwg.mxu0
    %v753 = vld [vmem:[#allocation3 + $0xa0] sm:$0xf]
    %v754 = vld [vmem:[#allocation3 + $0xa4] sm:$0xf]
    %v755 = vunpack.c.l.bf16 %v753
    %v756 = vunpack.c.l.bf16 %v754
    %v757 = vld [vmem:[#allocation3 + $0xa8] sm:$0x1]
    %v758 = vunpack.c.l.bf16 %v757
    %v759 = vperm.slane %v758, 0
    %760 = vmatpush.msra.mxu0 0.0
    %761 = vmatpush.msra.mxu0 0.0
    %762 = vmatpush.msra.mxu0 0.0
    %763 = vmatpush.msra.mxu0 0.0
    %764 = vmatpush.msra.mxu0 0.0
    %765 = vmatpush.msra.mxu0 0.0
    %766 = vmatpush.msra.mxu0 0.0
    %767 = vmatpush.msra.mxu0 0.0
    %768 = vmatpush.msra.mxu0 0.0
    %769 = vmatpush.msra.mxu0 0.0
    %770 = vmatpush.msra.mxu0 0.0
    %771 = vmatpush.msra.mxu0 0.0
    %772 = vmatpush.msra.mxu0 0.0
    %773 = vmatpush.msra.mxu0 0.0
    %774 = vmatpush.msra.mxu0 %v756
    %775 = vmatpush.msra.mxu0 %v755
    %v776 = vand.u32 %v42, 4294901760
    %v777 = vsub.f32 %v42, %v776
    %v778 = vand.u32 %v777, 4294901760
    %v779 = vsub.f32 %v777, %v778
    %v780 = vand.u32 %v779, 4294901760
    %781 = vmatmul.f32.gmra.mxu0 %v780
    %v782 = vpop.f32.mrf.mxu0
    %v783 = vadd.f32 %v759, %v782
    %784 = vdwg.mxu0
    %785 = vmatpush.msra.mxu0 0.0
    %786 = vmatpush.msra.mxu0 0.0
    %787 = vmatpush.msra.mxu0 0.0
    %788 = vmatpush.msra.mxu0 0.0
    %789 = vmatpush.msra.mxu0 0.0
    %790 = vmatpush.msra.mxu0 0.0
    %791 = vmatpush.msra.mxu0 0.0
    %792 = vmatpush.msra.mxu0 0.0
    %793 = vmatpush.msra.mxu0 0.0
    %794 = vmatpush.msra.mxu0 0.0
    %795 = vmatpush.msra.mxu0 0.0
    %796 = vmatpush.msra.mxu0 0.0
    %797 = vmatpush.msra.mxu0 0.0
    %798 = vmatpush.msra.mxu0 0.0
    %v799 = vsub.f32 %v756, %v756
    %v800 = vand.u32 %v799, 4294901760
    %v801 = vsub.f32 %v799, %v800
    %v802 = vand.u32 %v801, 4294901760
    %803 = vmatpush.msra.mxu0 %v802
    %v804 = vsub.f32 %v755, %v755
    %v805 = vand.u32 %v804, 4294901760
    %v806 = vsub.f32 %v804, %v805
    %v807 = vand.u32 %v806, 4294901760
    %808 = vmatpush.msra.mxu0 %v807
    %v809 = vand.u32 %v42, 4294901760
    %810 = vmatmul.f32.gmra.mxu0 %v809
    %v811 = vpop.f32.mrf.mxu0
    %v812 = vadd.f32 %v783, %v811
    %813 = vdwg.mxu0
    %814 = vmatpush.msra.mxu0 0.0
    %815 = vmatpush.msra.mxu0 0.0
    %816 = vmatpush.msra.mxu0 0.0
    %817 = vmatpush.msra.mxu0 0.0
    %818 = vmatpush.msra.mxu0 0.0
    %819 = vmatpush.msra.mxu0 0.0
    %820 = vmatpush.msra.mxu0 0.0
    %821 = vmatpush.msra.mxu0 0.0
    %822 = vmatpush.msra.mxu0 0.0
    %823 = vmatpush.msra.mxu0 0.0
    %824 = vmatpush.msra.mxu0 0.0
    %825 = vmatpush.msra.mxu0 0.0
    %826 = vmatpush.msra.mxu0 0.0
    %827 = vmatpush.msra.mxu0 0.0
    %v828 = vsub.f32 %v756, %v756
    %829 = vmatpush.msra.mxu0 %v828
    %v830 = vsub.f32 %v755, %v755
    %831 = vmatpush.msra.mxu0 %v830
    %v832 = vand.u32 %v42, 4294901760
    %v833 = vsub.f32 %v42, %v832
    %834 = vmatmul.f32.gmra.mxu0 %v833
    %v835 = vpop.f32.mrf.mxu0
    %v836 = vadd.f32 %v812, %v835
    %837 = vdwg.mxu0
    %838 = vmatpush.msra.mxu0 0.0
    %839 = vmatpush.msra.mxu0 0.0
    %840 = vmatpush.msra.mxu0 0.0
    %841 = vmatpush.msra.mxu0 0.0
    %842 = vmatpush.msra.mxu0 0.0
    %843 = vmatpush.msra.mxu0 0.0
    %844 = vmatpush.msra.mxu0 0.0
    %845 = vmatpush.msra.mxu0 0.0
    %846 = vmatpush.msra.mxu0 0.0
    %847 = vmatpush.msra.mxu0 0.0
    %848 = vmatpush.msra.mxu0 0.0
    %849 = vmatpush.msra.mxu0 0.0
    %850 = vmatpush.msra.mxu0 0.0
    %851 = vmatpush.msra.mxu0 0.0
    %852 = vmatpush.msra.mxu0 %v756
    %853 = vmatpush.msra.mxu0 %v755
    %v854 = vand.u32 %v42, 4294901760
    %v855 = vsub.f32 %v42, %v854
    %v856 = vand.u32 %v855, 4294901760
    %857 = vmatmul.f32.gmra.mxu0 %v856
    %v858 = vpop.f32.mrf.mxu0
    %v859 = vadd.f32 %v836, %v858
    %860 = vdwg.mxu0
    %861 = vmatpush.msra.mxu0 0.0
    %862 = vmatpush.msra.mxu0 0.0
    %863 = vmatpush.msra.mxu0 0.0
    %864 = vmatpush.msra.mxu0 0.0
    %865 = vmatpush.msra.mxu0 0.0
    %866 = vmatpush.msra.mxu0 0.0
    %867 = vmatpush.msra.mxu0 0.0
    %868 = vmatpush.msra.mxu0 0.0
    %869 = vmatpush.msra.mxu0 0.0
    %870 = vmatpush.msra.mxu0 0.0
    %871 = vmatpush.msra.mxu0 0.0
    %872 = vmatpush.msra.mxu0 0.0
    %873 = vmatpush.msra.mxu0 0.0
    %874 = vmatpush.msra.mxu0 0.0
    %v875 = vsub.f32 %v756, %v756
    %v876 = vand.u32 %v875, 4294901760
    %877 = vmatpush.msra.mxu0 %v876
    %v878 = vsub.f32 %v755, %v755
    %v879 = vand.u32 %v878, 4294901760
    %880 = vmatpush.msra.mxu0 %v879
    %v881 = vand.u32 %v42, 4294901760
    %882 = vmatmul.f32.gmra.mxu0 %v881
    %v883 = vpop.f32.mrf.mxu0
    %v884 = vadd.f32 %v859, %v883
    %885 = vdwg.mxu0
    %886 = vmatpush.msra.mxu0 0.0
    %887 = vmatpush.msra.mxu0 0.0
    %888 = vmatpush.msra.mxu0 0.0
    %889 = vmatpush.msra.mxu0 0.0
    %890 = vmatpush.msra.mxu0 0.0
    %891 = vmatpush.msra.mxu0 0.0
    %892 = vmatpush.msra.mxu0 0.0
    %893 = vmatpush.msra.mxu0 0.0
    %894 = vmatpush.msra.mxu0 0.0
    %895 = vmatpush.msra.mxu0 0.0
    %896 = vmatpush.msra.mxu0 0.0
    %897 = vmatpush.msra.mxu0 0.0
    %898 = vmatpush.msra.mxu0 0.0
    %899 = vmatpush.msra.mxu0 0.0
    %900 = vmatpush.msra.mxu0 %v756
    %901 = vmatpush.msra.mxu0 %v755
    %v902 = vand.u32 %v42, 4294901760
    %903 = vmatmul.f32.gmra.mxu0 %v902
    %v904 = vpop.f32.mrf.mxu0
    %v905 = vadd.f32 %v884, %v904
    %906 = vdwg.mxu0
    %v907 = vmax.f32 %v905, 0.0
    %v908 = vld [vmem:[#allocation3 + $0xb0] sm:$0xf]
    %v909 = vld [vmem:[#allocation3 + $0xb4] sm:$0xf]
    %v910 = vld [vmem:[#allocation3 + $0xb8] sm:$0xf]
    %v911 = vld [vmem:[#allocation3 + $0xbc] sm:$0xf]
    %v912 = vld [vmem:[#allocation3 + $0xc0] sm:$0xf]
    %v913 = vld [vmem:[#allocation3 + $0xc4] sm:$0xf]
    %v914 = vld [vmem:[#allocation3 + $0xc8] sm:$0xf]
    %v915 = vld [vmem:[#allocation3 + $0xcc] sm:$0xf]
    %v916 = vld [vmem:[#allocation3 + $0xd0] sm:$0xf]
    %v917 = vld [vmem:[#allocation3 + $0xd4] sm:$0xf]
    %v918 = vld [vmem:[#allocation3 + $0xd8] sm:$0xf]
    %v919 = vld [vmem:[#allocation3 + $0xdc] sm:$0xf]
    %v920 = vld [vmem:[#allocation3 + $0xe0] sm:$0xf]
    %v921 = vld [vmem:[#allocation3 + $0xe4] sm:$0xf]
    %v922 = vld [vmem:[#allocation3 + $0xe8] sm:$0xf]
    %v923 = vld [vmem:[#allocation3 + $0xec] sm:$0xf]
    %v924 = vunpack.c.l.bf16 %v908
    %v925 = vunpack.c.l.bf16 %v909
    %v926 = vunpack.c.l.bf16 %v910
    %v927 = vunpack.c.l.bf16 %v911
    %v928 = vunpack.c.l.bf16 %v912
    %v929 = vunpack.c.l.bf16 %v913
    %v930 = vunpack.c.l.bf16 %v914
    %v931 = vunpack.c.l.bf16 %v915
    %v932 = vunpack.c.l.bf16 %v916
    %v933 = vunpack.c.l.bf16 %v917
    %v934 = vunpack.c.l.bf16 %v918
    %v935 = vunpack.c.l.bf16 %v919
    %v936 = vunpack.c.l.bf16 %v920
    %v937 = vunpack.c.l.bf16 %v921
    %v938 = vunpack.c.l.bf16 %v922
    %v939 = vunpack.c.l.bf16 %v923
    %v940 = vld [vmem:[#allocation3 + $0xf0] sm:$0x1]
    %v941 = vunpack.c.l.bf16 %v940
    %v942 = vperm.slane %v941, 0
    %943 = vmatpush.msra.mxu0 %v939
    %944 = vmatpush.msra.mxu0 %v938
    %945 = vmatpush.msra.mxu0 %v937
    %946 = vmatpush.msra.mxu0 %v936
    %947 = vmatpush.msra.mxu0 %v935
    %948 = vmatpush.msra.mxu0 %v934
    %949 = vmatpush.msra.mxu0 %v933
    %950 = vmatpush.msra.mxu0 %v932
    %951 = vmatpush.msra.mxu0 %v931
    %952 = vmatpush.msra.mxu0 %v930
    %953 = vmatpush.msra.mxu0 %v929
    %954 = vmatpush.msra.mxu0 %v928
    %955 = vmatpush.msra.mxu0 %v927
    %956 = vmatpush.msra.mxu0 %v926
    %957 = vmatpush.msra.mxu0 %v925
    %958 = vmatpush.msra.mxu0 %v924
    %v959 = vand.u32 %v907, 4294901760
    %v960 = vsub.f32 %v907, %v959
    %v961 = vand.u32 %v960, 4294901760
    %v962 = vsub.f32 %v960, %v961
    %v963 = vand.u32 %v962, 4294901760
    %964 = vmatmul.f32.gmra.mxu0 %v963
    %v965 = vpop.f32.mrf.mxu0
    %v966 = vadd.f32 %v942, %v965
    %967 = vdwg.mxu0
    %v968 = vsub.f32 %v939, %v939
    %v969 = vand.u32 %v968, 4294901760
    %v970 = vsub.f32 %v968, %v969
    %v971 = vand.u32 %v970, 4294901760
    %972 = vmatpush.msra.mxu0 %v971
    %v973 = vsub.f32 %v938, %v938
    %v974 = vand.u32 %v973, 4294901760
    %v975 = vsub.f32 %v973, %v974
    %v976 = vand.u32 %v975, 4294901760
    %977 = vmatpush.msra.mxu0 %v976
    %v978 = vsub.f32 %v937, %v937
    %v979 = vand.u32 %v978, 4294901760
    %v980 = vsub.f32 %v978, %v979
    %v981 = vand.u32 %v980, 4294901760
    %982 = vmatpush.msra.mxu0 %v981
    %v983 = vsub.f32 %v936, %v936
    %v984 = vand.u32 %v983, 4294901760
    %v985 = vsub.f32 %v983, %v984
    %v986 = vand.u32 %v985, 4294901760
    %987 = vmatpush.msra.mxu0 %v986
    %v988 = vsub.f32 %v935, %v935
    %v989 = vand.u32 %v988, 4294901760
    %v990 = vsub.f32 %v988, %v989
    %v991 = vand.u32 %v990, 4294901760
    %992 = vmatpush.msra.mxu0 %v991
    %v993 = vsub.f32 %v934, %v934
    %v994 = vand.u32 %v993, 4294901760
    %v995 = vsub.f32 %v993, %v994
    %v996 = vand.u32 %v995, 4294901760
    %997 = vmatpush.msra.mxu0 %v996
    %v998 = vsub.f32 %v933, %v933
    %v999 = vand.u32 %v998, 4294901760
    %v1000 = vsub.f32 %v998, %v999
    %v1001 = vand.u32 %v1000, 4294901760
    %1002 = vmatpush.msra.mxu0 %v1001
    %v1003 = vsub.f32 %v932, %v932
    %v1004 = vand.u32 %v1003, 4294901760
    %v1005 = vsub.f32 %v1003, %v1004
    %v1006 = vand.u32 %v1005, 4294901760
    %1007 = vmatpush.msra.mxu0 %v1006
    %v1008 = vsub.f32 %v931, %v931
    %v1009 = vand.u32 %v1008, 4294901760
    %v1010 = vsub.f32 %v1008, %v1009
    %v1011 = vand.u32 %v1010, 4294901760
    %1012 = vmatpush.msra.mxu0 %v1011
    %v1013 = vsub.f32 %v930, %v930
    %v1014 = vand.u32 %v1013, 4294901760
    %v1015 = vsub.f32 %v1013, %v1014
    %v1016 = vand.u32 %v1015, 4294901760
    %1017 = vmatpush.msra.mxu0 %v1016
    %v1018 = vsub.f32 %v929, %v929
    %v1019 = vand.u32 %v1018, 4294901760
    %v1020 = vsub.f32 %v1018, %v1019
    %v1021 = vand.u32 %v1020, 4294901760
    %1022 = vmatpush.msra.mxu0 %v1021
    %v1023 = vsub.f32 %v928, %v928
    %v1024 = vand.u32 %v1023, 4294901760
    %v1025 = vsub.f32 %v1023, %v1024
    %v1026 = vand.u32 %v1025, 4294901760
    %1027 = vmatpush.msra.mxu0 %v1026
    %v1028 = vsub.f32 %v927, %v927
    %v1029 = vand.u32 %v1028, 4294901760
    %v1030 = vsub.f32 %v1028, %v1029
    %v1031 = vand.u32 %v1030, 4294901760
    %1032 = vmatpush.msra.mxu0 %v1031
    %v1033 = vsub.f32 %v926, %v926
    %v1034 = vand.u32 %v1033, 4294901760
    %v1035 = vsub.f32 %v1033, %v1034
    %v1036 = vand.u32 %v1035, 4294901760
    %1037 = vmatpush.msra.mxu0 %v1036
    %v1038 = vsub.f32 %v925, %v925
    %v1039 = vand.u32 %v1038, 4294901760
    %v1040 = vsub.f32 %v1038, %v1039
    %v1041 = vand.u32 %v1040, 4294901760
    %1042 = vmatpush.msra.mxu0 %v1041
    %v1043 = vsub.f32 %v924, %v924
    %v1044 = vand.u32 %v1043, 4294901760
    %v1045 = vsub.f32 %v1043, %v1044
    %v1046 = vand.u32 %v1045, 4294901760
    %1047 = vmatpush.msra.mxu0 %v1046
    %v1048 = vand.u32 %v907, 4294901760
    %1049 = vmatmul.f32.gmra.mxu0 %v1048
    %v1050 = vpop.f32.mrf.mxu0
    %v1051 = vadd.f32 %v966, %v1050
    %1052 = vdwg.mxu0
    %v1053 = vsub.f32 %v939, %v939
    %1054 = vmatpush.msra.mxu0 %v1053
    %v1055 = vsub.f32 %v938, %v938
    %1056 = vmatpush.msra.mxu0 %v1055
    %v1057 = vsub.f32 %v937, %v937
    %1058 = vmatpush.msra.mxu0 %v1057
    %v1059 = vsub.f32 %v936, %v936
    %1060 = vmatpush.msra.mxu0 %v1059
    %v1061 = vsub.f32 %v935, %v935
    %1062 = vmatpush.msra.mxu0 %v1061
    %v1063 = vsub.f32 %v934, %v934
    %1064 = vmatpush.msra.mxu0 %v1063
    %v1065 = vsub.f32 %v933, %v933
    %1066 = vmatpush.msra.mxu0 %v1065
    %v1067 = vsub.f32 %v932, %v932
    %1068 = vmatpush.msra.mxu0 %v1067
    %v1069 = vsub.f32 %v931, %v931
    %1070 = vmatpush.msra.mxu0 %v1069
    %v1071 = vsub.f32 %v930, %v930
    %1072 = vmatpush.msra.mxu0 %v1071
    %v1073 = vsub.f32 %v929, %v929
    %1074 = vmatpush.msra.mxu0 %v1073
    %v1075 = vsub.f32 %v928, %v928
    %1076 = vmatpush.msra.mxu0 %v1075
    %v1077 = vsub.f32 %v927, %v927
    %1078 = vmatpush.msra.mxu0 %v1077
    %v1079 = vsub.f32 %v926, %v926
    %1080 = vmatpush.msra.mxu0 %v1079
    %v1081 = vsub.f32 %v925, %v925
    %1082 = vmatpush.msra.mxu0 %v1081
    %v1083 = vsub.f32 %v924, %v924
    %1084 = vmatpush.msra.mxu0 %v1083
    %v1085 = vand.u32 %v907, 4294901760
    %v1086 = vsub.f32 %v907, %v1085
    %1087 = vmatmul.f32.gmra.mxu0 %v1086
    %v1088 = vpop.f32.mrf.mxu0
    %v1089 = vadd.f32 %v1051, %v1088
    %1090 = vdwg.mxu0
    %1091 = vmatpush.msra.mxu0 %v939
    %1092 = vmatpush.msra.mxu0 %v938
    %1093 = vmatpush.msra.mxu0 %v937
    %1094 = vmatpush.msra.mxu0 %v936
    %1095 = vmatpush.msra.mxu0 %v935
    %1096 = vmatpush.msra.mxu0 %v934
    %1097 = vmatpush.msra.mxu0 %v933
    %1098 = vmatpush.msra.mxu0 %v932
    %1099 = vmatpush.msra.mxu0 %v931
    %1100 = vmatpush.msra.mxu0 %v930
    %1101 = vmatpush.msra.mxu0 %v929
    %1102 = vmatpush.msra.mxu0 %v928
    %1103 = vmatpush.msra.mxu0 %v927
    %1104 = vmatpush.msra.mxu0 %v926
    %1105 = vmatpush.msra.mxu0 %v925
    %1106 = vmatpush.msra.mxu0 %v924
    %v1107 = vand.u32 %v907, 4294901760
    %v1108 = vsub.f32 %v907, %v1107
    %v1109 = vand.u32 %v1108, 4294901760
    %1110 = vmatmul.f32.gmra.mxu0 %v1109
    %v1111 = vpop.f32.mrf.mxu0
    %v1112 = vadd.f32 %v1089, %v1111
    %1113 = vdwg.mxu0
    %v1114 = vsub.f32 %v939, %v939
    %v1115 = vand.u32 %v1114, 4294901760
    %1116 = vmatpush.msra.mxu0 %v1115
    %v1117 = vsub.f32 %v938, %v938
    %v1118 = vand.u32 %v1117, 4294901760
    %1119 = vmatpush.msra.mxu0 %v1118
    %v1120 = vsub.f32 %v937, %v937
    %v1121 = vand.u32 %v1120, 4294901760
    %1122 = vmatpush.msra.mxu0 %v1121
    %v1123 = vsub.f32 %v936, %v936
    %v1124 = vand.u32 %v1123, 4294901760
    %1125 = vmatpush.msra.mxu0 %v1124
    %v1126 = vsub.f32 %v935, %v935
    %v1127 = vand.u32 %v1126, 4294901760
    %1128 = vmatpush.msra.mxu0 %v1127
    %v1129 = vsub.f32 %v934, %v934
    %v1130 = vand.u32 %v1129, 4294901760
    %1131 = vmatpush.msra.mxu0 %v1130
    %v1132 = vsub.f32 %v933, %v933
    %v1133 = vand.u32 %v1132, 4294901760
    %1134 = vmatpush.msra.mxu0 %v1133
    %v1135 = vsub.f32 %v932, %v932
    %v1136 = vand.u32 %v1135, 4294901760
    %1137 = vmatpush.msra.mxu0 %v1136
    %v1138 = vsub.f32 %v931, %v931
    %v1139 = vand.u32 %v1138, 4294901760
    %1140 = vmatpush.msra.mxu0 %v1139
    %v1141 = vsub.f32 %v930, %v930
    %v1142 = vand.u32 %v1141, 4294901760
    %1143 = vmatpush.msra.mxu0 %v1142
    %v1144 = vsub.f32 %v929, %v929
    %v1145 = vand.u32 %v1144, 4294901760
    %1146 = vmatpush.msra.mxu0 %v1145
    %v1147 = vsub.f32 %v928, %v928
    %v1148 = vand.u32 %v1147, 4294901760
    %1149 = vmatpush.msra.mxu0 %v1148
    %v1150 = vsub.f32 %v927, %v927
    %v1151 = vand.u32 %v1150, 4294901760
    %1152 = vmatpush.msra.mxu0 %v1151
    %v1153 = vsub.f32 %v926, %v926
    %v1154 = vand.u32 %v1153, 4294901760
    %1155 = vmatpush.msra.mxu0 %v1154
    %v1156 = vsub.f32 %v925, %v925
    %v1157 = vand.u32 %v1156, 4294901760
    %1158 = vmatpush.msra.mxu0 %v1157
    %v1159 = vsub.f32 %v924, %v924
    %v1160 = vand.u32 %v1159, 4294901760
    %1161 = vmatpush.msra.mxu0 %v1160
    %v1162 = vand.u32 %v907, 4294901760
    %1163 = vmatmul.f32.gmra.mxu0 %v1162
    %v1164 = vpop.f32.mrf.mxu0
    %v1165 = vadd.f32 %v1112, %v1164
    %1166 = vdwg.mxu0
    %1167 = vmatpush.msra.mxu0 %v939
    %1168 = vmatpush.msra.mxu0 %v938
    %1169 = vmatpush.msra.mxu0 %v937
    %1170 = vmatpush.msra.mxu0 %v936
    %1171 = vmatpush.msra.mxu0 %v935
    %1172 = vmatpush.msra.mxu0 %v934
    %1173 = vmatpush.msra.mxu0 %v933
    %1174 = vmatpush.msra.mxu0 %v932
    %1175 = vmatpush.msra.mxu0 %v931
    %1176 = vmatpush.msra.mxu0 %v930
    %1177 = vmatpush.msra.mxu0 %v929
    %1178 = vmatpush.msra.mxu0 %v928
    %1179 = vmatpush.msra.mxu0 %v927
    %1180 = vmatpush.msra.mxu0 %v926
    %1181 = vmatpush.msra.mxu0 %v925
    %1182 = vmatpush.msra.mxu0 %v924
    %v1183 = vand.u32 %v907, 4294901760
    %1184 = vmatmul.f32.gmra.mxu0 %v1183
    %v1185 = vpop.f32.mrf.mxu0
    %v1186 = vadd.f32 %v1165, %v1185
    %1187 = vdwg.mxu0
    %v1188 = vmax.f32 %v1186, 0.0
    %v1189 = vld [vmem:[#allocation3 + $0xf8] sm:$0xf]
    %v1190 = vld [vmem:[#allocation3 + $0xfc] sm:$0xf]
    %v1191 = vld [vmem:[#allocation3 + $0x100] sm:$0xf]
    %v1192 = vld [vmem:[#allocation3 + $0x104] sm:$0xf]
    %v1193 = vld [vmem:[#allocation3 + $0x108] sm:$0xf]
    %v1194 = vld [vmem:[#allocation3 + $0x10c] sm:$0xf]
    %v1195 = vld [vmem:[#allocation3 + $0x110] sm:$0xf]
    %v1196 = vld [vmem:[#allocation3 + $0x114] sm:$0xf]
    %v1197 = vld [vmem:[#allocation3 + $0x118] sm:$0xf]
    %v1198 = vld [vmem:[#allocation3 + $0x11c] sm:$0xf]
    %v1199 = vld [vmem:[#allocation3 + $0x120] sm:$0xf]
    %v1200 = vld [vmem:[#allocation3 + $0x124] sm:$0xf]
    %v1201 = vld [vmem:[#allocation3 + $0x128] sm:$0xf]
    %v1202 = vld [vmem:[#allocation3 + $0x12c] sm:$0xf]
    %v1203 = vld [vmem:[#allocation3 + $0x130] sm:$0xf]
    %v1204 = vld [vmem:[#allocation3 + $0x134] sm:$0xf]
    %v1205 = vunpack.c.l.bf16 %v1189
    %v1206 = vunpack.c.l.bf16 %v1190
    %v1207 = vunpack.c.l.bf16 %v1191
    %v1208 = vunpack.c.l.bf16 %v1192
    %v1209 = vunpack.c.l.bf16 %v1193
    %v1210 = vunpack.c.l.bf16 %v1194
    %v1211 = vunpack.c.l.bf16 %v1195
    %v1212 = vunpack.c.l.bf16 %v1196
    %v1213 = vunpack.c.l.bf16 %v1197
    %v1214 = vunpack.c.l.bf16 %v1198
    %v1215 = vunpack.c.l.bf16 %v1199
    %v1216 = vunpack.c.l.bf16 %v1200
    %v1217 = vunpack.c.l.bf16 %v1201
    %v1218 = vunpack.c.l.bf16 %v1202
    %v1219 = vunpack.c.l.bf16 %v1203
    %v1220 = vunpack.c.l.bf16 %v1204
    %v1221 = vld [vmem:[#allocation3 + $0x138] sm:$0x1]
    %v1222 = vunpack.c.l.bf16 %v1221
    %v1223 = vperm.slane %v1222, 0
    %1224 = vmatpush.msra.mxu0 %v1220
    %1225 = vmatpush.msra.mxu0 %v1219
    %1226 = vmatpush.msra.mxu0 %v1218
    %1227 = vmatpush.msra.mxu0 %v1217
    %1228 = vmatpush.msra.mxu0 %v1216
    %1229 = vmatpush.msra.mxu0 %v1215
    %1230 = vmatpush.msra.mxu0 %v1214
    %1231 = vmatpush.msra.mxu0 %v1213
    %1232 = vmatpush.msra.mxu0 %v1212
    %1233 = vmatpush.msra.mxu0 %v1211
    %1234 = vmatpush.msra.mxu0 %v1210
    %1235 = vmatpush.msra.mxu0 %v1209
    %1236 = vmatpush.msra.mxu0 %v1208
    %1237 = vmatpush.msra.mxu0 %v1207
    %1238 = vmatpush.msra.mxu0 %v1206
    %1239 = vmatpush.msra.mxu0 %v1205
    %v1240 = vand.u32 %v1188, 4294901760
    %v1241 = vsub.f32 %v1188, %v1240
    %v1242 = vand.u32 %v1241, 4294901760
    %v1243 = vsub.f32 %v1241, %v1242
    %v1244 = vand.u32 %v1243, 4294901760
    %1245 = vmatmul.f32.gmra.mxu0 %v1244
    %v1246 = vpop.f32.mrf.mxu0
    %v1247 = vadd.f32 %v1223, %v1246
    %1248 = vdwg.mxu0
    %v1249 = vsub.f32 %v1220, %v1220
    %v1250 = vand.u32 %v1249, 4294901760
    %v1251 = vsub.f32 %v1249, %v1250
    %v1252 = vand.u32 %v1251, 4294901760
    %1253 = vmatpush.msra.mxu0 %v1252
    %v1254 = vsub.f32 %v1219, %v1219
    %v1255 = vand.u32 %v1254, 4294901760
    %v1256 = vsub.f32 %v1254, %v1255
    %v1257 = vand.u32 %v1256, 4294901760
    %1258 = vmatpush.msra.mxu0 %v1257
    %v1259 = vsub.f32 %v1218, %v1218
    %v1260 = vand.u32 %v1259, 4294901760
    %v1261 = vsub.f32 %v1259, %v1260
    %v1262 = vand.u32 %v1261, 4294901760
    %1263 = vmatpush.msra.mxu0 %v1262
    %v1264 = vsub.f32 %v1217, %v1217
    %v1265 = vand.u32 %v1264, 4294901760
    %v1266 = vsub.f32 %v1264, %v1265
    %v1267 = vand.u32 %v1266, 4294901760
    %1268 = vmatpush.msra.mxu0 %v1267
    %v1269 = vsub.f32 %v1216, %v1216
    %v1270 = vand.u32 %v1269, 4294901760
    %v1271 = vsub.f32 %v1269, %v1270
    %v1272 = vand.u32 %v1271, 4294901760
    %1273 = vmatpush.msra.mxu0 %v1272
    %v1274 = vsub.f32 %v1215, %v1215
    %v1275 = vand.u32 %v1274, 4294901760
    %v1276 = vsub.f32 %v1274, %v1275
    %v1277 = vand.u32 %v1276, 4294901760
    %1278 = vmatpush.msra.mxu0 %v1277
    %v1279 = vsub.f32 %v1214, %v1214
    %v1280 = vand.u32 %v1279, 4294901760
    %v1281 = vsub.f32 %v1279, %v1280
    %v1282 = vand.u32 %v1281, 4294901760
    %1283 = vmatpush.msra.mxu0 %v1282
    %v1284 = vsub.f32 %v1213, %v1213
    %v1285 = vand.u32 %v1284, 4294901760
    %v1286 = vsub.f32 %v1284, %v1285
    %v1287 = vand.u32 %v1286, 4294901760
    %1288 = vmatpush.msra.mxu0 %v1287
    %v1289 = vsub.f32 %v1212, %v1212
    %v1290 = vand.u32 %v1289, 4294901760
    %v1291 = vsub.f32 %v1289, %v1290
    %v1292 = vand.u32 %v1291, 4294901760
    %1293 = vmatpush.msra.mxu0 %v1292
    %v1294 = vsub.f32 %v1211, %v1211
    %v1295 = vand.u32 %v1294, 4294901760
    %v1296 = vsub.f32 %v1294, %v1295
    %v1297 = vand.u32 %v1296, 4294901760
    %1298 = vmatpush.msra.mxu0 %v1297
    %v1299 = vsub.f32 %v1210, %v1210
    %v1300 = vand.u32 %v1299, 4294901760
    %v1301 = vsub.f32 %v1299, %v1300
    %v1302 = vand.u32 %v1301, 4294901760
    %1303 = vmatpush.msra.mxu0 %v1302
    %v1304 = vsub.f32 %v1209, %v1209
    %v1305 = vand.u32 %v1304, 4294901760
    %v1306 = vsub.f32 %v1304, %v1305
    %v1307 = vand.u32 %v1306, 4294901760
    %1308 = vmatpush.msra.mxu0 %v1307
    %v1309 = vsub.f32 %v1208, %v1208
    %v1310 = vand.u32 %v1309, 4294901760
    %v1311 = vsub.f32 %v1309, %v1310
    %v1312 = vand.u32 %v1311, 4294901760
    %1313 = vmatpush.msra.mxu0 %v1312
    %v1314 = vsub.f32 %v1207, %v1207
    %v1315 = vand.u32 %v1314, 4294901760
    %v1316 = vsub.f32 %v1314, %v1315
    %v1317 = vand.u32 %v1316, 4294901760
    %1318 = vmatpush.msra.mxu0 %v1317
    %v1319 = vsub.f32 %v1206, %v1206
    %v1320 = vand.u32 %v1319, 4294901760
    %v1321 = vsub.f32 %v1319, %v1320
    %v1322 = vand.u32 %v1321, 4294901760
    %1323 = vmatpush.msra.mxu0 %v1322
    %v1324 = vsub.f32 %v1205, %v1205
    %v1325 = vand.u32 %v1324, 4294901760
    %v1326 = vsub.f32 %v1324, %v1325
    %v1327 = vand.u32 %v1326, 4294901760
    %1328 = vmatpush.msra.mxu0 %v1327
    %v1329 = vand.u32 %v1188, 4294901760
    %1330 = vmatmul.f32.gmra.mxu0 %v1329
    %v1331 = vpop.f32.mrf.mxu0
    %v1332 = vadd.f32 %v1247, %v1331
    %1333 = vdwg.mxu0
    %v1334 = vsub.f32 %v1220, %v1220
    %1335 = vmatpush.msra.mxu0 %v1334
    %v1336 = vsub.f32 %v1219, %v1219
    %1337 = vmatpush.msra.mxu0 %v1336
    %v1338 = vsub.f32 %v1218, %v1218
    %1339 = vmatpush.msra.mxu0 %v1338
    %v1340 = vsub.f32 %v1217, %v1217
    %1341 = vmatpush.msra.mxu0 %v1340
    %v1342 = vsub.f32 %v1216, %v1216
    %1343 = vmatpush.msra.mxu0 %v1342
    %v1344 = vsub.f32 %v1215, %v1215
    %1345 = vmatpush.msra.mxu0 %v1344
    %v1346 = vsub.f32 %v1214, %v1214
    %1347 = vmatpush.msra.mxu0 %v1346
    %v1348 = vsub.f32 %v1213, %v1213
    %1349 = vmatpush.msra.mxu0 %v1348
    %v1350 = vsub.f32 %v1212, %v1212
    %1351 = vmatpush.msra.mxu0 %v1350
    %v1352 = vsub.f32 %v1211, %v1211
    %1353 = vmatpush.msra.mxu0 %v1352
    %v1354 = vsub.f32 %v1210, %v1210
    %1355 = vmatpush.msra.mxu0 %v1354
    %v1356 = vsub.f32 %v1209, %v1209
    %1357 = vmatpush.msra.mxu0 %v1356
    %v1358 = vsub.f32 %v1208, %v1208
    %1359 = vmatpush.msra.mxu0 %v1358
    %v1360 = vsub.f32 %v1207, %v1207
    %1361 = vmatpush.msra.mxu0 %v1360
    %v1362 = vsub.f32 %v1206, %v1206
    %1363 = vmatpush.msra.mxu0 %v1362
    %v1364 = vsub.f32 %v1205, %v1205
    %1365 = vmatpush.msra.mxu0 %v1364
    %v1366 = vand.u32 %v1188, 4294901760
    %v1367 = vsub.f32 %v1188, %v1366
    %1368 = vmatmul.f32.gmra.mxu0 %v1367
    %v1369 = vpop.f32.mrf.mxu0
    %v1370 = vadd.f32 %v1332, %v1369
    %1371 = vdwg.mxu0
    %1372 = vmatpush.msra.mxu0 %v1220
    %1373 = vmatpush.msra.mxu0 %v1219
    %1374 = vmatpush.msra.mxu0 %v1218
    %1375 = vmatpush.msra.mxu0 %v1217
    %1376 = vmatpush.msra.mxu0 %v1216
    %1377 = vmatpush.msra.mxu0 %v1215
    %1378 = vmatpush.msra.mxu0 %v1214
    %1379 = vmatpush.msra.mxu0 %v1213
    %1380 = vmatpush.msra.mxu0 %v1212
    %1381 = vmatpush.msra.mxu0 %v1211
    %1382 = vmatpush.msra.mxu0 %v1210
    %1383 = vmatpush.msra.mxu0 %v1209
    %1384 = vmatpush.msra.mxu0 %v1208
    %1385 = vmatpush.msra.mxu0 %v1207
    %1386 = vmatpush.msra.mxu0 %v1206
    %1387 = vmatpush.msra.mxu0 %v1205
    %v1388 = vand.u32 %v1188, 4294901760
    %v1389 = vsub.f32 %v1188, %v1388
    %v1390 = vand.u32 %v1389, 4294901760
    %1391 = vmatmul.f32.gmra.mxu0 %v1390
    %v1392 = vpop.f32.mrf.mxu0
    %v1393 = vadd.f32 %v1370, %v1392
    %1394 = vdwg.mxu0
    %v1395 = vsub.f32 %v1220, %v1220
    %v1396 = vand.u32 %v1395, 4294901760
    %1397 = vmatpush.msra.mxu0 %v1396
    %v1398 = vsub.f32 %v1219, %v1219
    %v1399 = vand.u32 %v1398, 4294901760
    %1400 = vmatpush.msra.mxu0 %v1399
    %v1401 = vsub.f32 %v1218, %v1218
    %v1402 = vand.u32 %v1401, 4294901760
    %1403 = vmatpush.msra.mxu0 %v1402
    %v1404 = vsub.f32 %v1217, %v1217
    %v1405 = vand.u32 %v1404, 4294901760
    %1406 = vmatpush.msra.mxu0 %v1405
    %v1407 = vsub.f32 %v1216, %v1216
    %v1408 = vand.u32 %v1407, 4294901760
    %1409 = vmatpush.msra.mxu0 %v1408
    %v1410 = vsub.f32 %v1215, %v1215
    %v1411 = vand.u32 %v1410, 4294901760
    %1412 = vmatpush.msra.mxu0 %v1411
    %v1413 = vsub.f32 %v1214, %v1214
    %v1414 = vand.u32 %v1413, 4294901760
    %1415 = vmatpush.msra.mxu0 %v1414
    %v1416 = vsub.f32 %v1213, %v1213
    %v1417 = vand.u32 %v1416, 4294901760
    %1418 = vmatpush.msra.mxu0 %v1417
    %v1419 = vsub.f32 %v1212, %v1212
    %v1420 = vand.u32 %v1419, 4294901760
    %1421 = vmatpush.msra.mxu0 %v1420
    %v1422 = vsub.f32 %v1211, %v1211
    %v1423 = vand.u32 %v1422, 4294901760
    %1424 = vmatpush.msra.mxu0 %v1423
    %v1425 = vsub.f32 %v1210, %v1210
    %v1426 = vand.u32 %v1425, 4294901760
    %1427 = vmatpush.msra.mxu0 %v1426
    %v1428 = vsub.f32 %v1209, %v1209
    %v1429 = vand.u32 %v1428, 4294901760
    %1430 = vmatpush.msra.mxu0 %v1429
    %v1431 = vsub.f32 %v1208, %v1208
    %v1432 = vand.u32 %v1431, 4294901760
    %1433 = vmatpush.msra.mxu0 %v1432
    %v1434 = vsub.f32 %v1207, %v1207
    %v1435 = vand.u32 %v1434, 4294901760
    %1436 = vmatpush.msra.mxu0 %v1435
    %v1437 = vsub.f32 %v1206, %v1206
    %v1438 = vand.u32 %v1437, 4294901760
    %1439 = vmatpush.msra.mxu0 %v1438
    %v1440 = vsub.f32 %v1205, %v1205
    %v1441 = vand.u32 %v1440, 4294901760
    %1442 = vmatpush.msra.mxu0 %v1441
    %v1443 = vand.u32 %v1188, 4294901760
    %1444 = vmatmul.f32.gmra.mxu0 %v1443
    %v1445 = vpop.f32.mrf.mxu0
    %v1446 = vadd.f32 %v1393, %v1445
    %1447 = vdwg.mxu0
    %1448 = vmatpush.msra.mxu0 %v1220
    %1449 = vmatpush.msra.mxu0 %v1219
    %1450 = vmatpush.msra.mxu0 %v1218
    %1451 = vmatpush.msra.mxu0 %v1217
    %1452 = vmatpush.msra.mxu0 %v1216
    %1453 = vmatpush.msra.mxu0 %v1215
    %1454 = vmatpush.msra.mxu0 %v1214
    %1455 = vmatpush.msra.mxu0 %v1213
    %1456 = vmatpush.msra.mxu0 %v1212
    %1457 = vmatpush.msra.mxu0 %v1211
    %1458 = vmatpush.msra.mxu0 %v1210
    %1459 = vmatpush.msra.mxu0 %v1209
    %1460 = vmatpush.msra.mxu0 %v1208
    %1461 = vmatpush.msra.mxu0 %v1207
    %1462 = vmatpush.msra.mxu0 %v1206
    %1463 = vmatpush.msra.mxu0 %v1205
    %v1464 = vand.u32 %v1188, 4294901760
    %1465 = vmatmul.f32.gmra.mxu0 %v1464
    %v1466 = vpop.f32.mrf.mxu0
    %v1467 = vadd.f32 %v1446, %v1466
    %1468 = vdwg.mxu0
    %v1469 = vld [vmem:[#allocation3 + $0x140] sm:$0xf]
    %v1470 = vld [vmem:[#allocation3 + $0x144] sm:$0xf]
    %v1471 = vunpack.c.l.bf16 %v1469
    %v1472 = vunpack.c.l.bf16 %v1470
    %v1473 = vld [vmem:[#allocation3 + $0x148] sm:$0x1]
    %v1474 = vunpack.c.l.bf16 %v1473
    %v1475 = vperm.slane %v1474, 0
    %1476 = vmatpush.msra.mxu0 0.0
    %1477 = vmatpush.msra.mxu0 0.0
    %1478 = vmatpush.msra.mxu0 0.0
    %1479 = vmatpush.msra.mxu0 0.0
    %1480 = vmatpush.msra.mxu0 0.0
    %1481 = vmatpush.msra.mxu0 0.0
    %1482 = vmatpush.msra.mxu0 0.0
    %1483 = vmatpush.msra.mxu0 0.0
    %1484 = vmatpush.msra.mxu0 0.0
    %1485 = vmatpush.msra.mxu0 0.0
    %1486 = vmatpush.msra.mxu0 0.0
    %1487 = vmatpush.msra.mxu0 0.0
    %1488 = vmatpush.msra.mxu0 0.0
    %1489 = vmatpush.msra.mxu0 0.0
    %1490 = vmatpush.msra.mxu0 %v1472
    %1491 = vmatpush.msra.mxu0 %v1471
    %v1492 = vand.u32 %v42, 4294901760
    %v1493 = vsub.f32 %v42, %v1492
    %v1494 = vand.u32 %v1493, 4294901760
    %v1495 = vsub.f32 %v1493, %v1494
    %v1496 = vand.u32 %v1495, 4294901760
    %1497 = vmatmul.f32.gmra.mxu0 %v1496
    %v1498 = vpop.f32.mrf.mxu0
    %v1499 = vadd.f32 %v1475, %v1498
    %1500 = vdwg.mxu0
    %1501 = vmatpush.msra.mxu0 0.0
    %1502 = vmatpush.msra.mxu0 0.0
    %1503 = vmatpush.msra.mxu0 0.0
    %1504 = vmatpush.msra.mxu0 0.0
    %1505 = vmatpush.msra.mxu0 0.0
    %1506 = vmatpush.msra.mxu0 0.0
    %1507 = vmatpush.msra.mxu0 0.0
    %1508 = vmatpush.msra.mxu0 0.0
    %1509 = vmatpush.msra.mxu0 0.0
    %1510 = vmatpush.msra.mxu0 0.0
    %1511 = vmatpush.msra.mxu0 0.0
    %1512 = vmatpush.msra.mxu0 0.0
    %1513 = vmatpush.msra.mxu0 0.0
    %1514 = vmatpush.msra.mxu0 0.0
    %v1515 = vsub.f32 %v1472, %v1472
    %v1516 = vand.u32 %v1515, 4294901760
    %v1517 = vsub.f32 %v1515, %v1516
    %v1518 = vand.u32 %v1517, 4294901760
    %1519 = vmatpush.msra.mxu0 %v1518
    %v1520 = vsub.f32 %v1471, %v1471
    %v1521 = vand.u32 %v1520, 4294901760
    %v1522 = vsub.f32 %v1520, %v1521
    %v1523 = vand.u32 %v1522, 4294901760
    %1524 = vmatpush.msra.mxu0 %v1523
    %v1525 = vand.u32 %v42, 4294901760
    %1526 = vmatmul.f32.gmra.mxu0 %v1525
    %v1527 = vpop.f32.mrf.mxu0
    %v1528 = vadd.f32 %v1499, %v1527
    %1529 = vdwg.mxu0
    %1530 = vmatpush.msra.mxu0 0.0
    %1531 = vmatpush.msra.mxu0 0.0
    %1532 = vmatpush.msra.mxu0 0.0
    %1533 = vmatpush.msra.mxu0 0.0
    %1534 = vmatpush.msra.mxu0 0.0
    %1535 = vmatpush.msra.mxu0 0.0
    %1536 = vmatpush.msra.mxu0 0.0
    %1537 = vmatpush.msra.mxu0 0.0
    %1538 = vmatpush.msra.mxu0 0.0
    %1539 = vmatpush.msra.mxu0 0.0
    %1540 = vmatpush.msra.mxu0 0.0
    %1541 = vmatpush.msra.mxu0 0.0
    %1542 = vmatpush.msra.mxu0 0.0
    %1543 = vmatpush.msra.mxu0 0.0
    %v1544 = vsub.f32 %v1472, %v1472
    %1545 = vmatpush.msra.mxu0 %v1544
    %v1546 = vsub.f32 %v1471, %v1471
    %1547 = vmatpush.msra.mxu0 %v1546
    %v1548 = vand.u32 %v42, 4294901760
    %v1549 = vsub.f32 %v42, %v1548
    %1550 = vmatmul.f32.gmra.mxu0 %v1549
    %v1551 = vpop.f32.mrf.mxu0
    %v1552 = vadd.f32 %v1528, %v1551
    %1553 = vdwg.mxu0
    %1554 = vmatpush.msra.mxu0 0.0
    %1555 = vmatpush.msra.mxu0 0.0
    %1556 = vmatpush.msra.mxu0 0.0
    %1557 = vmatpush.msra.mxu0 0.0
    %1558 = vmatpush.msra.mxu0 0.0
    %1559 = vmatpush.msra.mxu0 0.0
    %1560 = vmatpush.msra.mxu0 0.0
    %1561 = vmatpush.msra.mxu0 0.0
    %1562 = vmatpush.msra.mxu0 0.0
    %1563 = vmatpush.msra.mxu0 0.0
    %1564 = vmatpush.msra.mxu0 0.0
    %1565 = vmatpush.msra.mxu0 0.0
    %1566 = vmatpush.msra.mxu0 0.0
    %1567 = vmatpush.msra.mxu0 0.0
    %1568 = vmatpush.msra.mxu0 %v1472
    %1569 = vmatpush.msra.mxu0 %v1471
    %v1570 = vand.u32 %v42, 4294901760
    %v1571 = vsub.f32 %v42, %v1570
    %v1572 = vand.u32 %v1571, 4294901760
    %1573 = vmatmul.f32.gmra.mxu0 %v1572
    %v1574 = vpop.f32.mrf.mxu0
    %v1575 = vadd.f32 %v1552, %v1574
    %1576 = vdwg.mxu0
    %1577 = vmatpush.msra.mxu0 0.0
    %1578 = vmatpush.msra.mxu0 0.0
    %1579 = vmatpush.msra.mxu0 0.0
    %1580 = vmatpush.msra.mxu0 0.0
    %1581 = vmatpush.msra.mxu0 0.0
    %1582 = vmatpush.msra.mxu0 0.0
    %1583 = vmatpush.msra.mxu0 0.0
    %1584 = vmatpush.msra.mxu0 0.0
    %1585 = vmatpush.msra.mxu0 0.0
    %1586 = vmatpush.msra.mxu0 0.0
    %1587 = vmatpush.msra.mxu0 0.0
    %1588 = vmatpush.msra.mxu0 0.0
    %1589 = vmatpush.msra.mxu0 0.0
    %1590 = vmatpush.msra.mxu0 0.0
    %v1591 = vsub.f32 %v1472, %v1472
    %v1592 = vand.u32 %v1591, 4294901760
    %1593 = vmatpush.msra.mxu0 %v1592
    %v1594 = vsub.f32 %v1471, %v1471
    %v1595 = vand.u32 %v1594, 4294901760
    %1596 = vmatpush.msra.mxu0 %v1595
    %v1597 = vand.u32 %v42, 4294901760
    %1598 = vmatmul.f32.gmra.mxu0 %v1597
    %v1599 = vpop.f32.mrf.mxu0
    %v1600 = vadd.f32 %v1575, %v1599
    %1601 = vdwg.mxu0
    %1602 = vmatpush.msra.mxu0 0.0
    %1603 = vmatpush.msra.mxu0 0.0
    %1604 = vmatpush.msra.mxu0 0.0
    %1605 = vmatpush.msra.mxu0 0.0
    %1606 = vmatpush.msra.mxu0 0.0
    %1607 = vmatpush.msra.mxu0 0.0
    %1608 = vmatpush.msra.mxu0 0.0
    %1609 = vmatpush.msra.mxu0 0.0
    %1610 = vmatpush.msra.mxu0 0.0
    %1611 = vmatpush.msra.mxu0 0.0
    %1612 = vmatpush.msra.mxu0 0.0
    %1613 = vmatpush.msra.mxu0 0.0
    %1614 = vmatpush.msra.mxu0 0.0
    %1615 = vmatpush.msra.mxu0 0.0
    %1616 = vmatpush.msra.mxu0 %v1472
    %1617 = vmatpush.msra.mxu0 %v1471
    %v1618 = vand.u32 %v42, 4294901760
    %1619 = vmatmul.f32.gmra.mxu0 %v1618
    %v1620 = vpop.f32.mrf.mxu0
    %v1621 = vadd.f32 %v1600, %v1620
    %1622 = vdwg.mxu0
    %v1623 = vmax.f32 %v1621, 0.0
    %v1624 = vld [vmem:[#allocation3 + $0x150] sm:$0xf]
    %v1625 = vld [vmem:[#allocation3 + $0x154] sm:$0xf]
    %v1626 = vld [vmem:[#allocation3 + $0x158] sm:$0xf]
    %v1627 = vld [vmem:[#allocation3 + $0x15c] sm:$0xf]
    %v1628 = vld [vmem:[#allocation3 + $0x160] sm:$0xf]
    %v1629 = vld [vmem:[#allocation3 + $0x164] sm:$0xf]
    %v1630 = vld [vmem:[#allocation3 + $0x168] sm:$0xf]
    %v1631 = vld [vmem:[#allocation3 + $0x16c] sm:$0xf]
    %v1632 = vld [vmem:[#allocation3 + $0x170] sm:$0xf]
    %v1633 = vld [vmem:[#allocation3 + $0x174] sm:$0xf]
    %v1634 = vld [vmem:[#allocation3 + $0x178] sm:$0xf]
    %v1635 = vld [vmem:[#allocation3 + $0x17c] sm:$0xf]
    %v1636 = vld [vmem:[#allocation3 + $0x180] sm:$0xf]
    %v1637 = vld [vmem:[#allocation3 + $0x184] sm:$0xf]
    %v1638 = vld [vmem:[#allocation3 + $0x188] sm:$0xf]
    %v1639 = vld [vmem:[#allocation3 + $0x18c] sm:$0xf]
    %v1640 = vunpack.c.l.bf16 %v1624
    %v1641 = vunpack.c.l.bf16 %v1625
    %v1642 = vunpack.c.l.bf16 %v1626
    %v1643 = vunpack.c.l.bf16 %v1627
    %v1644 = vunpack.c.l.bf16 %v1628
    %v1645 = vunpack.c.l.bf16 %v1629
    %v1646 = vunpack.c.l.bf16 %v1630
    %v1647 = vunpack.c.l.bf16 %v1631
    %v1648 = vunpack.c.l.bf16 %v1632
    %v1649 = vunpack.c.l.bf16 %v1633
    %v1650 = vunpack.c.l.bf16 %v1634
    %v1651 = vunpack.c.l.bf16 %v1635
    %v1652 = vunpack.c.l.bf16 %v1636
    %v1653 = vunpack.c.l.bf16 %v1637
    %v1654 = vunpack.c.l.bf16 %v1638
    %v1655 = vunpack.c.l.bf16 %v1639
    %v1656 = vld [vmem:[#allocation3 + $0x190] sm:$0x1]
    %v1657 = vunpack.c.l.bf16 %v1656
    %v1658 = vperm.slane %v1657, 0
    %1659 = vmatpush.msra.mxu0 %v1655
    %1660 = vmatpush.msra.mxu0 %v1654
    %1661 = vmatpush.msra.mxu0 %v1653
    %1662 = vmatpush.msra.mxu0 %v1652
    %1663 = vmatpush.msra.mxu0 %v1651
    %1664 = vmatpush.msra.mxu0 %v1650
    %1665 = vmatpush.msra.mxu0 %v1649
    %1666 = vmatpush.msra.mxu0 %v1648
    %1667 = vmatpush.msra.mxu0 %v1647
    %1668 = vmatpush.msra.mxu0 %v1646
    %1669 = vmatpush.msra.mxu0 %v1645
    %1670 = vmatpush.msra.mxu0 %v1644
    %1671 = vmatpush.msra.mxu0 %v1643
    %1672 = vmatpush.msra.mxu0 %v1642
    %1673 = vmatpush.msra.mxu0 %v1641
    %1674 = vmatpush.msra.mxu0 %v1640
    %v1675 = vand.u32 %v1623, 4294901760
    %v1676 = vsub.f32 %v1623, %v1675
    %v1677 = vand.u32 %v1676, 4294901760
    %v1678 = vsub.f32 %v1676, %v1677
    %v1679 = vand.u32 %v1678, 4294901760
    %1680 = vmatmul.f32.gmra.mxu0 %v1679
    %v1681 = vpop.f32.mrf.mxu0
    %v1682 = vadd.f32 %v1658, %v1681
    %1683 = vdwg.mxu0
    %v1684 = vsub.f32 %v1655, %v1655
    %v1685 = vand.u32 %v1684, 4294901760
    %v1686 = vsub.f32 %v1684, %v1685
    %v1687 = vand.u32 %v1686, 4294901760
    %1688 = vmatpush.msra.mxu0 %v1687
    %v1689 = vsub.f32 %v1654, %v1654
    %v1690 = vand.u32 %v1689, 4294901760
    %v1691 = vsub.f32 %v1689, %v1690
    %v1692 = vand.u32 %v1691, 4294901760
    %1693 = vmatpush.msra.mxu0 %v1692
    %v1694 = vsub.f32 %v1653, %v1653
    %v1695 = vand.u32 %v1694, 4294901760
    %v1696 = vsub.f32 %v1694, %v1695
    %v1697 = vand.u32 %v1696, 4294901760
    %1698 = vmatpush.msra.mxu0 %v1697
    %v1699 = vsub.f32 %v1652, %v1652
    %v1700 = vand.u32 %v1699, 4294901760
    %v1701 = vsub.f32 %v1699, %v1700
    %v1702 = vand.u32 %v1701, 4294901760
    %1703 = vmatpush.msra.mxu0 %v1702
    %v1704 = vsub.f32 %v1651, %v1651
    %v1705 = vand.u32 %v1704, 4294901760
    %v1706 = vsub.f32 %v1704, %v1705
    %v1707 = vand.u32 %v1706, 4294901760
    %1708 = vmatpush.msra.mxu0 %v1707
    %v1709 = vsub.f32 %v1650, %v1650
    %v1710 = vand.u32 %v1709, 4294901760
    %v1711 = vsub.f32 %v1709, %v1710
    %v1712 = vand.u32 %v1711, 4294901760
    %1713 = vmatpush.msra.mxu0 %v1712
    %v1714 = vsub.f32 %v1649, %v1649
    %v1715 = vand.u32 %v1714, 4294901760
    %v1716 = vsub.f32 %v1714, %v1715
    %v1717 = vand.u32 %v1716, 4294901760
    %1718 = vmatpush.msra.mxu0 %v1717
    %v1719 = vsub.f32 %v1648, %v1648
    %v1720 = vand.u32 %v1719, 4294901760
    %v1721 = vsub.f32 %v1719, %v1720
    %v1722 = vand.u32 %v1721, 4294901760
    %1723 = vmatpush.msra.mxu0 %v1722
    %v1724 = vsub.f32 %v1647, %v1647
    %v1725 = vand.u32 %v1724, 4294901760
    %v1726 = vsub.f32 %v1724, %v1725
    %v1727 = vand.u32 %v1726, 4294901760
    %1728 = vmatpush.msra.mxu0 %v1727
    %v1729 = vsub.f32 %v1646, %v1646
    %v1730 = vand.u32 %v1729, 4294901760
    %v1731 = vsub.f32 %v1729, %v1730
    %v1732 = vand.u32 %v1731, 4294901760
    %1733 = vmatpush.msra.mxu0 %v1732
    %v1734 = vsub.f32 %v1645, %v1645
    %v1735 = vand.u32 %v1734, 4294901760
    %v1736 = vsub.f32 %v1734, %v1735
    %v1737 = vand.u32 %v1736, 4294901760
    %1738 = vmatpush.msra.mxu0 %v1737
    %v1739 = vsub.f32 %v1644, %v1644
    %v1740 = vand.u32 %v1739, 4294901760
    %v1741 = vsub.f32 %v1739, %v1740
    %v1742 = vand.u32 %v1741, 4294901760
    %1743 = vmatpush.msra.mxu0 %v1742
    %v1744 = vsub.f32 %v1643, %v1643
    %v1745 = vand.u32 %v1744, 4294901760
    %v1746 = vsub.f32 %v1744, %v1745
    %v1747 = vand.u32 %v1746, 4294901760
    %1748 = vmatpush.msra.mxu0 %v1747
    %v1749 = vsub.f32 %v1642, %v1642
    %v1750 = vand.u32 %v1749, 4294901760
    %v1751 = vsub.f32 %v1749, %v1750
    %v1752 = vand.u32 %v1751, 4294901760
    %1753 = vmatpush.msra.mxu0 %v1752
    %v1754 = vsub.f32 %v1641, %v1641
    %v1755 = vand.u32 %v1754, 4294901760
    %v1756 = vsub.f32 %v1754, %v1755
    %v1757 = vand.u32 %v1756, 4294901760
    %1758 = vmatpush.msra.mxu0 %v1757
    %v1759 = vsub.f32 %v1640, %v1640
    %v1760 = vand.u32 %v1759, 4294901760
    %v1761 = vsub.f32 %v1759, %v1760
    %v1762 = vand.u32 %v1761, 4294901760
    %1763 = vmatpush.msra.mxu0 %v1762
    %v1764 = vand.u32 %v1623, 4294901760
    %1765 = vmatmul.f32.gmra.mxu0 %v1764
    %v1766 = vpop.f32.mrf.mxu0
    %v1767 = vadd.f32 %v1682, %v1766
    %1768 = vdwg.mxu0
    %v1769 = vsub.f32 %v1655, %v1655
    %1770 = vmatpush.msra.mxu0 %v1769
    %v1771 = vsub.f32 %v1654, %v1654
    %1772 = vmatpush.msra.mxu0 %v1771
    %v1773 = vsub.f32 %v1653, %v1653
    %1774 = vmatpush.msra.mxu0 %v1773
    %v1775 = vsub.f32 %v1652, %v1652
    %1776 = vmatpush.msra.mxu0 %v1775
    %v1777 = vsub.f32 %v1651, %v1651
    %1778 = vmatpush.msra.mxu0 %v1777
    %v1779 = vsub.f32 %v1650, %v1650
    %1780 = vmatpush.msra.mxu0 %v1779
    %v1781 = vsub.f32 %v1649, %v1649
    %1782 = vmatpush.msra.mxu0 %v1781
    %v1783 = vsub.f32 %v1648, %v1648
    %1784 = vmatpush.msra.mxu0 %v1783
    %v1785 = vsub.f32 %v1647, %v1647
    %1786 = vmatpush.msra.mxu0 %v1785
    %v1787 = vsub.f32 %v1646, %v1646
    %1788 = vmatpush.msra.mxu0 %v1787
    %v1789 = vsub.f32 %v1645, %v1645
    %1790 = vmatpush.msra.mxu0 %v1789
    %v1791 = vsub.f32 %v1644, %v1644
    %1792 = vmatpush.msra.mxu0 %v1791
    %v1793 = vsub.f32 %v1643, %v1643
    %1794 = vmatpush.msra.mxu0 %v1793
    %v1795 = vsub.f32 %v1642, %v1642
    %1796 = vmatpush.msra.mxu0 %v1795
    %v1797 = vsub.f32 %v1641, %v1641
    %1798 = vmatpush.msra.mxu0 %v1797
    %v1799 = vsub.f32 %v1640, %v1640
    %1800 = vmatpush.msra.mxu0 %v1799
    %v1801 = vand.u32 %v1623, 4294901760
    %v1802 = vsub.f32 %v1623, %v1801
    %1803 = vmatmul.f32.gmra.mxu0 %v1802
    %v1804 = vpop.f32.mrf.mxu0
    %v1805 = vadd.f32 %v1767, %v1804
    %1806 = vdwg.mxu0
    %1807 = vmatpush.msra.mxu0 %v1655
    %1808 = vmatpush.msra.mxu0 %v1654
    %1809 = vmatpush.msra.mxu0 %v1653
    %1810 = vmatpush.msra.mxu0 %v1652
    %1811 = vmatpush.msra.mxu0 %v1651
    %1812 = vmatpush.msra.mxu0 %v1650
    %1813 = vmatpush.msra.mxu0 %v1649
    %1814 = vmatpush.msra.mxu0 %v1648
    %1815 = vmatpush.msra.mxu0 %v1647
    %1816 = vmatpush.msra.mxu0 %v1646
    %1817 = vmatpush.msra.mxu0 %v1645
    %1818 = vmatpush.msra.mxu0 %v1644
    %1819 = vmatpush.msra.mxu0 %v1643
    %1820 = vmatpush.msra.mxu0 %v1642
    %1821 = vmatpush.msra.mxu0 %v1641
    %1822 = vmatpush.msra.mxu0 %v1640
    %v1823 = vand.u32 %v1623, 4294901760
    %v1824 = vsub.f32 %v1623, %v1823
    %v1825 = vand.u32 %v1824, 4294901760
    %1826 = vmatmul.f32.gmra.mxu0 %v1825
    %v1827 = vpop.f32.mrf.mxu0
    %v1828 = vadd.f32 %v1805, %v1827
    %1829 = vdwg.mxu0
    %v1830 = vsub.f32 %v1655, %v1655
    %v1831 = vand.u32 %v1830, 4294901760
    %1832 = vmatpush.msra.mxu0 %v1831
    %v1833 = vsub.f32 %v1654, %v1654
    %v1834 = vand.u32 %v1833, 4294901760
    %1835 = vmatpush.msra.mxu0 %v1834
    %v1836 = vsub.f32 %v1653, %v1653
    %v1837 = vand.u32 %v1836, 4294901760
    %1838 = vmatpush.msra.mxu0 %v1837
    %v1839 = vsub.f32 %v1652, %v1652
    %v1840 = vand.u32 %v1839, 4294901760
    %1841 = vmatpush.msra.mxu0 %v1840
    %v1842 = vsub.f32 %v1651, %v1651
    %v1843 = vand.u32 %v1842, 4294901760
    %1844 = vmatpush.msra.mxu0 %v1843
    %v1845 = vsub.f32 %v1650, %v1650
    %v1846 = vand.u32 %v1845, 4294901760
    %1847 = vmatpush.msra.mxu0 %v1846
    %v1848 = vsub.f32 %v1649, %v1649
    %v1849 = vand.u32 %v1848, 4294901760
    %1850 = vmatpush.msra.mxu0 %v1849
    %v1851 = vsub.f32 %v1648, %v1648
    %v1852 = vand.u32 %v1851, 4294901760
    %1853 = vmatpush.msra.mxu0 %v1852
    %v1854 = vsub.f32 %v1647, %v1647
    %v1855 = vand.u32 %v1854, 4294901760
    %1856 = vmatpush.msra.mxu0 %v1855
    %v1857 = vsub.f32 %v1646, %v1646
    %v1858 = vand.u32 %v1857, 4294901760
    %1859 = vmatpush.msra.mxu0 %v1858
    %v1860 = vsub.f32 %v1645, %v1645
    %v1861 = vand.u32 %v1860, 4294901760
    %1862 = vmatpush.msra.mxu0 %v1861
    %v1863 = vsub.f32 %v1644, %v1644
    %v1864 = vand.u32 %v1863, 4294901760
    %1865 = vmatpush.msra.mxu0 %v1864
    %v1866 = vsub.f32 %v1643, %v1643
    %v1867 = vand.u32 %v1866, 4294901760
    %1868 = vmatpush.msra.mxu0 %v1867
    %v1869 = vsub.f32 %v1642, %v1642
    %v1870 = vand.u32 %v1869, 4294901760
    %1871 = vmatpush.msra.mxu0 %v1870
    %v1872 = vsub.f32 %v1641, %v1641
    %v1873 = vand.u32 %v1872, 4294901760
    %1874 = vmatpush.msra.mxu0 %v1873
    %v1875 = vsub.f32 %v1640, %v1640
    %v1876 = vand.u32 %v1875, 4294901760
    %1877 = vmatpush.msra.mxu0 %v1876
    %v1878 = vand.u32 %v1623, 4294901760
    %1879 = vmatmul.f32.gmra.mxu0 %v1878
    %v1880 = vpop.f32.mrf.mxu0
    %v1881 = vadd.f32 %v1828, %v1880
    %1882 = vdwg.mxu0
    %1883 = vmatpush.msra.mxu0 %v1655
    %1884 = vmatpush.msra.mxu0 %v1654
    %1885 = vmatpush.msra.mxu0 %v1653
    %1886 = vmatpush.msra.mxu0 %v1652
    %1887 = vmatpush.msra.mxu0 %v1651
    %1888 = vmatpush.msra.mxu0 %v1650
    %1889 = vmatpush.msra.mxu0 %v1649
    %1890 = vmatpush.msra.mxu0 %v1648
    %1891 = vmatpush.msra.mxu0 %v1647
    %1892 = vmatpush.msra.mxu0 %v1646
    %1893 = vmatpush.msra.mxu0 %v1645
    %1894 = vmatpush.msra.mxu0 %v1644
    %1895 = vmatpush.msra.mxu0 %v1643
    %1896 = vmatpush.msra.mxu0 %v1642
    %1897 = vmatpush.msra.mxu0 %v1641
    %1898 = vmatpush.msra.mxu0 %v1640
    %v1899 = vand.u32 %v1623, 4294901760
    %1900 = vmatmul.f32.gmra.mxu0 %v1899
    %v1901 = vpop.f32.mrf.mxu0
    %v1902 = vadd.f32 %v1881, %v1901
    %1903 = vdwg.mxu0
    %v1904 = vmax.f32 %v1902, 0.0
    %v1905 = vld [vmem:[#allocation3 + $0x198] sm:$0xf]
    %v1906 = vld [vmem:[#allocation3 + $0x19c] sm:$0xf]
    %v1907 = vld [vmem:[#allocation3 + $0x1a0] sm:$0xf]
    %v1908 = vld [vmem:[#allocation3 + $0x1a4] sm:$0xf]
    %v1909 = vld [vmem:[#allocation3 + $0x1a8] sm:$0xf]
    %v1910 = vld [vmem:[#allocation3 + $0x1ac] sm:$0xf]
    %v1911 = vld [vmem:[#allocation3 + $0x1b0] sm:$0xf]
    %v1912 = vld [vmem:[#allocation3 + $0x1b4] sm:$0xf]
    %v1913 = vld [vmem:[#allocation3 + $0x1b8] sm:$0xf]
    %v1914 = vld [vmem:[#allocation3 + $0x1bc] sm:$0xf]
    %v1915 = vld [vmem:[#allocation3 + $0x1c0] sm:$0xf]
    %v1916 = vld [vmem:[#allocation3 + $0x1c4] sm:$0xf]
    %v1917 = vld [vmem:[#allocation3 + $0x1c8] sm:$0xf]
    %v1918 = vld [vmem:[#allocation3 + $0x1cc] sm:$0xf]
    %v1919 = vld [vmem:[#allocation3 + $0x1d0] sm:$0xf]
    %v1920 = vld [vmem:[#allocation3 + $0x1d4] sm:$0xf]
    %v1921 = vunpack.c.l.bf16 %v1905
    %v1922 = vunpack.c.l.bf16 %v1906
    %v1923 = vunpack.c.l.bf16 %v1907
    %v1924 = vunpack.c.l.bf16 %v1908
    %v1925 = vunpack.c.l.bf16 %v1909
    %v1926 = vunpack.c.l.bf16 %v1910
    %v1927 = vunpack.c.l.bf16 %v1911
    %v1928 = vunpack.c.l.bf16 %v1912
    %v1929 = vunpack.c.l.bf16 %v1913
    %v1930 = vunpack.c.l.bf16 %v1914
    %v1931 = vunpack.c.l.bf16 %v1915
    %v1932 = vunpack.c.l.bf16 %v1916
    %v1933 = vunpack.c.l.bf16 %v1917
    %v1934 = vunpack.c.l.bf16 %v1918
    %v1935 = vunpack.c.l.bf16 %v1919
    %v1936 = vunpack.c.l.bf16 %v1920
    %v1937 = vld [vmem:[#allocation3 + $0x1d8] sm:$0x1]
    %v1938 = vunpack.c.l.bf16 %v1937
    %v1939 = vperm.slane %v1938, 0
    %1940 = vmatpush.msra.mxu0 %v1936
    %1941 = vmatpush.msra.mxu0 %v1935
    %1942 = vmatpush.msra.mxu0 %v1934
    %1943 = vmatpush.msra.mxu0 %v1933
    %1944 = vmatpush.msra.mxu0 %v1932
    %1945 = vmatpush.msra.mxu0 %v1931
    %1946 = vmatpush.msra.mxu0 %v1930
    %1947 = vmatpush.msra.mxu0 %v1929
    %1948 = vmatpush.msra.mxu0 %v1928
    %1949 = vmatpush.msra.mxu0 %v1927
    %1950 = vmatpush.msra.mxu0 %v1926
    %1951 = vmatpush.msra.mxu0 %v1925
    %1952 = vmatpush.msra.mxu0 %v1924
    %1953 = vmatpush.msra.mxu0 %v1923
    %1954 = vmatpush.msra.mxu0 %v1922
    %1955 = vmatpush.msra.mxu0 %v1921
    %v1956 = vand.u32 %v1904, 4294901760
    %v1957 = vsub.f32 %v1904, %v1956
    %v1958 = vand.u32 %v1957, 4294901760
    %v1959 = vsub.f32 %v1957, %v1958
    %v1960 = vand.u32 %v1959, 4294901760
    %1961 = vmatmul.f32.gmra.mxu0 %v1960
    %v1962 = vpop.f32.mrf.mxu0
    %v1963 = vadd.f32 %v1939, %v1962
    %1964 = vdwg.mxu0
    %v1965 = vsub.f32 %v1936, %v1936
    %v1966 = vand.u32 %v1965, 4294901760
    %v1967 = vsub.f32 %v1965, %v1966
    %v1968 = vand.u32 %v1967, 4294901760
    %1969 = vmatpush.msra.mxu0 %v1968
    %v1970 = vsub.f32 %v1935, %v1935
    %v1971 = vand.u32 %v1970, 4294901760
    %v1972 = vsub.f32 %v1970, %v1971
    %v1973 = vand.u32 %v1972, 4294901760
    %1974 = vmatpush.msra.mxu0 %v1973
    %v1975 = vsub.f32 %v1934, %v1934
    %v1976 = vand.u32 %v1975, 4294901760
    %v1977 = vsub.f32 %v1975, %v1976
    %v1978 = vand.u32 %v1977, 4294901760
    %1979 = vmatpush.msra.mxu0 %v1978
    %v1980 = vsub.f32 %v1933, %v1933
    %v1981 = vand.u32 %v1980, 4294901760
    %v1982 = vsub.f32 %v1980, %v1981
    %v1983 = vand.u32 %v1982, 4294901760
    %1984 = vmatpush.msra.mxu0 %v1983
    %v1985 = vsub.f32 %v1932, %v1932
    %v1986 = vand.u32 %v1985, 4294901760
    %v1987 = vsub.f32 %v1985, %v1986
    %v1988 = vand.u32 %v1987, 4294901760
    %1989 = vmatpush.msra.mxu0 %v1988
    %v1990 = vsub.f32 %v1931, %v1931
    %v1991 = vand.u32 %v1990, 4294901760
    %v1992 = vsub.f32 %v1990, %v1991
    %v1993 = vand.u32 %v1992, 4294901760
    %1994 = vmatpush.msra.mxu0 %v1993
    %v1995 = vsub.f32 %v1930, %v1930
    %v1996 = vand.u32 %v1995, 4294901760
    %v1997 = vsub.f32 %v1995, %v1996
    %v1998 = vand.u32 %v1997, 4294901760
    %1999 = vmatpush.msra.mxu0 %v1998
    %v2000 = vsub.f32 %v1929, %v1929
    %v2001 = vand.u32 %v2000, 4294901760
    %v2002 = vsub.f32 %v2000, %v2001
    %v2003 = vand.u32 %v2002, 4294901760
    %2004 = vmatpush.msra.mxu0 %v2003
    %v2005 = vsub.f32 %v1928, %v1928
    %v2006 = vand.u32 %v2005, 4294901760
    %v2007 = vsub.f32 %v2005, %v2006
    %v2008 = vand.u32 %v2007, 4294901760
    %2009 = vmatpush.msra.mxu0 %v2008
    %v2010 = vsub.f32 %v1927, %v1927
    %v2011 = vand.u32 %v2010, 4294901760
    %v2012 = vsub.f32 %v2010, %v2011
    %v2013 = vand.u32 %v2012, 4294901760
    %2014 = vmatpush.msra.mxu0 %v2013
    %v2015 = vsub.f32 %v1926, %v1926
    %v2016 = vand.u32 %v2015, 4294901760
    %v2017 = vsub.f32 %v2015, %v2016
    %v2018 = vand.u32 %v2017, 4294901760
    %2019 = vmatpush.msra.mxu0 %v2018
    %v2020 = vsub.f32 %v1925, %v1925
    %v2021 = vand.u32 %v2020, 4294901760
    %v2022 = vsub.f32 %v2020, %v2021
    %v2023 = vand.u32 %v2022, 4294901760
    %2024 = vmatpush.msra.mxu0 %v2023
    %v2025 = vsub.f32 %v1924, %v1924
    %v2026 = vand.u32 %v2025, 4294901760
    %v2027 = vsub.f32 %v2025, %v2026
    %v2028 = vand.u32 %v2027, 4294901760
    %2029 = vmatpush.msra.mxu0 %v2028
    %v2030 = vsub.f32 %v1923, %v1923
    %v2031 = vand.u32 %v2030, 4294901760
    %v2032 = vsub.f32 %v2030, %v2031
    %v2033 = vand.u32 %v2032, 4294901760
    %2034 = vmatpush.msra.mxu0 %v2033
    %v2035 = vsub.f32 %v1922, %v1922
    %v2036 = vand.u32 %v2035, 4294901760
    %v2037 = vsub.f32 %v2035, %v2036
    %v2038 = vand.u32 %v2037, 4294901760
    %2039 = vmatpush.msra.mxu0 %v2038
    %v2040 = vsub.f32 %v1921, %v1921
    %v2041 = vand.u32 %v2040, 4294901760
    %v2042 = vsub.f32 %v2040, %v2041
    %v2043 = vand.u32 %v2042, 4294901760
    %2044 = vmatpush.msra.mxu0 %v2043
    %v2045 = vand.u32 %v1904, 4294901760
    %2046 = vmatmul.f32.gmra.mxu0 %v2045
    %v2047 = vpop.f32.mrf.mxu0
    %v2048 = vadd.f32 %v1963, %v2047
    %2049 = vdwg.mxu0
    %v2050 = vsub.f32 %v1936, %v1936
    %2051 = vmatpush.msra.mxu0 %v2050
    %v2052 = vsub.f32 %v1935, %v1935
    %2053 = vmatpush.msra.mxu0 %v2052
    %v2054 = vsub.f32 %v1934, %v1934
    %2055 = vmatpush.msra.mxu0 %v2054
    %v2056 = vsub.f32 %v1933, %v1933
    %2057 = vmatpush.msra.mxu0 %v2056
    %v2058 = vsub.f32 %v1932, %v1932
    %2059 = vmatpush.msra.mxu0 %v2058
    %v2060 = vsub.f32 %v1931, %v1931
    %2061 = vmatpush.msra.mxu0 %v2060
    %v2062 = vsub.f32 %v1930, %v1930
    %2063 = vmatpush.msra.mxu0 %v2062
    %v2064 = vsub.f32 %v1929, %v1929
    %2065 = vmatpush.msra.mxu0 %v2064
    %v2066 = vsub.f32 %v1928, %v1928
    %2067 = vmatpush.msra.mxu0 %v2066
    %v2068 = vsub.f32 %v1927, %v1927
    %2069 = vmatpush.msra.mxu0 %v2068
    %v2070 = vsub.f32 %v1926, %v1926
    %2071 = vmatpush.msra.mxu0 %v2070
    %v2072 = vsub.f32 %v1925, %v1925
    %2073 = vmatpush.msra.mxu0 %v2072
    %v2074 = vsub.f32 %v1924, %v1924
    %2075 = vmatpush.msra.mxu0 %v2074
    %v2076 = vsub.f32 %v1923, %v1923
    %2077 = vmatpush.msra.mxu0 %v2076
    %v2078 = vsub.f32 %v1922, %v1922
    %2079 = vmatpush.msra.mxu0 %v2078
    %v2080 = vsub.f32 %v1921, %v1921
    %2081 = vmatpush.msra.mxu0 %v2080
    %v2082 = vand.u32 %v1904, 4294901760
    %v2083 = vsub.f32 %v1904, %v2082
    %2084 = vmatmul.f32.gmra.mxu0 %v2083
    %v2085 = vpop.f32.mrf.mxu0
    %v2086 = vadd.f32 %v2048, %v2085
    %2087 = vdwg.mxu0
    %2088 = vmatpush.msra.mxu0 %v1936
    %2089 = vmatpush.msra.mxu0 %v1935
    %2090 = vmatpush.msra.mxu0 %v1934
    %2091 = vmatpush.msra.mxu0 %v1933
    %2092 = vmatpush.msra.mxu0 %v1932
    %2093 = vmatpush.msra.mxu0 %v1931
    %2094 = vmatpush.msra.mxu0 %v1930
    %2095 = vmatpush.msra.mxu0 %v1929
    %2096 = vmatpush.msra.mxu0 %v1928
    %2097 = vmatpush.msra.mxu0 %v1927
    %2098 = vmatpush.msra.mxu0 %v1926
    %2099 = vmatpush.msra.mxu0 %v1925
    %2100 = vmatpush.msra.mxu0 %v1924
    %2101 = vmatpush.msra.mxu0 %v1923
    %2102 = vmatpush.msra.mxu0 %v1922
    %2103 = vmatpush.msra.mxu0 %v1921
    %v2104 = vand.u32 %v1904, 4294901760
    %v2105 = vsub.f32 %v1904, %v2104
    %v2106 = vand.u32 %v2105, 4294901760
    %2107 = vmatmul.f32.gmra.mxu0 %v2106
    %v2108 = vpop.f32.mrf.mxu0
    %v2109 = vadd.f32 %v2086, %v2108
    %2110 = vdwg.mxu0
    %v2111 = vsub.f32 %v1936, %v1936
    %v2112 = vand.u32 %v2111, 4294901760
    %2113 = vmatpush.msra.mxu0 %v2112
    %v2114 = vsub.f32 %v1935, %v1935
    %v2115 = vand.u32 %v2114, 4294901760
    %2116 = vmatpush.msra.mxu0 %v2115
    %v2117 = vsub.f32 %v1934, %v1934
    %v2118 = vand.u32 %v2117, 4294901760
    %2119 = vmatpush.msra.mxu0 %v2118
    %v2120 = vsub.f32 %v1933, %v1933
    %v2121 = vand.u32 %v2120, 4294901760
    %2122 = vmatpush.msra.mxu0 %v2121
    %v2123 = vsub.f32 %v1932, %v1932
    %v2124 = vand.u32 %v2123, 4294901760
    %2125 = vmatpush.msra.mxu0 %v2124
    %v2126 = vsub.f32 %v1931, %v1931
    %v2127 = vand.u32 %v2126, 4294901760
    %2128 = vmatpush.msra.mxu0 %v2127
    %v2129 = vsub.f32 %v1930, %v1930
    %v2130 = vand.u32 %v2129, 4294901760
    %2131 = vmatpush.msra.mxu0 %v2130
    %v2132 = vsub.f32 %v1929, %v1929
    %v2133 = vand.u32 %v2132, 4294901760
    %2134 = vmatpush.msra.mxu0 %v2133
    %v2135 = vsub.f32 %v1928, %v1928
    %v2136 = vand.u32 %v2135, 4294901760
    %2137 = vmatpush.msra.mxu0 %v2136
    %v2138 = vsub.f32 %v1927, %v1927
    %v2139 = vand.u32 %v2138, 4294901760
    %2140 = vmatpush.msra.mxu0 %v2139
    %v2141 = vsub.f32 %v1926, %v1926
    %v2142 = vand.u32 %v2141, 4294901760
    %2143 = vmatpush.msra.mxu0 %v2142
    %v2144 = vsub.f32 %v1925, %v1925
    %v2145 = vand.u32 %v2144, 4294901760
    %2146 = vmatpush.msra.mxu0 %v2145
    %v2147 = vsub.f32 %v1924, %v1924
    %v2148 = vand.u32 %v2147, 4294901760
    %2149 = vmatpush.msra.mxu0 %v2148
    %v2150 = vsub.f32 %v1923, %v1923
    %v2151 = vand.u32 %v2150, 4294901760
    %2152 = vmatpush.msra.mxu0 %v2151
    %v2153 = vsub.f32 %v1922, %v1922
    %v2154 = vand.u32 %v2153, 4294901760
    %2155 = vmatpush.msra.mxu0 %v2154
    %v2156 = vsub.f32 %v1921, %v1921
    %v2157 = vand.u32 %v2156, 4294901760
    %2158 = vmatpush.msra.mxu0 %v2157
    %v2159 = vand.u32 %v1904, 4294901760
    %2160 = vmatmul.f32.gmra.mxu0 %v2159
    %v2161 = vpop.f32.mrf.mxu0
    %v2162 = vadd.f32 %v2109, %v2161
    %2163 = vdwg.mxu0
    %2164 = vmatpush.msra.mxu0 %v1936
    %2165 = vmatpush.msra.mxu0 %v1935
    %2166 = vmatpush.msra.mxu0 %v1934
    %2167 = vmatpush.msra.mxu0 %v1933
    %2168 = vmatpush.msra.mxu0 %v1932
    %2169 = vmatpush.msra.mxu0 %v1931
    %2170 = vmatpush.msra.mxu0 %v1930
    %2171 = vmatpush.msra.mxu0 %v1929
    %2172 = vmatpush.msra.mxu0 %v1928
    %2173 = vmatpush.msra.mxu0 %v1927
    %2174 = vmatpush.msra.mxu0 %v1926
    %2175 = vmatpush.msra.mxu0 %v1925
    %2176 = vmatpush.msra.mxu0 %v1924
    %2177 = vmatpush.msra.mxu0 %v1923
    %2178 = vmatpush.msra.mxu0 %v1922
    %2179 = vmatpush.msra.mxu0 %v1921
    %v2180 = vand.u32 %v1904, 4294901760
    %2181 = vmatmul.f32.gmra.mxu0 %v2180
    %v2182 = vpop.f32.mrf.mxu0
    %v2183 = vadd.f32 %v2162, %v2182
    %2184 = vdwg.mxu0
    %v2185 = vlaneseq
    %v2186 = vshrl.u32 %v2185, 7
    %v2187 = vlaneseq
    %v2188 = vand.u32 %v2187, 127
    %v2189 = vmul.u32 %v2186, 128
    %v2190 = vadd.s32 %v2189, %v2188
    %v2191 = vmul.u32 %v2190, 2654435769
    %s2192 = sld [smem:[#allocation2]]
    %v2193 = vstv %s2192
    %v2194 = vadd.s32 %v2191, %v2193
    %v2195 = vshra.s32 %v2194, 16
    %v2196 = vand.u32 %v2195, 65535
    %v2197 = vxor.u32 %v2194, %v2196
    %v2198 = vmul.u32 %v2197, 2246822507
    %v2199 = vshra.s32 %v2198, 13
    %v2200 = vand.u32 %v2199, 524287
    %v2201 = vxor.u32 %v2198, %v2200
    %v2202 = vmul.u32 %v2201, 3266489909
    %v2203 = vshra.s32 %v2202, 16
    %v2204 = vand.u32 %v2203, 65535
    %v2205 = vxor.u32 %v2202, %v2204
    %v2206 = vand.u32 %v2205, 8388607
    %v2207 = vcvt.s32.f32 %v2206
    %v2208 = vmul.f32 %v2207, 1.1920929e-07
    %v2209 = vsub.f32 0.0, %v1467
    %v2210 = vmul.f32 %v2209, 1.442695
    %v2211 = vpow.pop %v2210
    %v2212 = vadd.f32 %v2211, 1.0
    %v2213 = vrcp.pop %v2212
    %v2214 = vmul.f32 %v2212, %v2213
    %v2215 = vsub.f32 1.0, %v2214
    %v2216 = vmul.f32 %v2213, %v2215
    %v2217 = vadd.f32 %v2213, %v2216
    %vm2218 = vweird.f32 %v2212
    %vm2219 = vweird.f32 %v2213
    %vm2220 = vmor %vm2218, %vm2219
    %v2221 = vsel %vm2220, %v2213, %v2217
    %v2222 = vand.u32 2147483647, %v2212
    %vm2223 = vcmp.eq.f32.partialorder %v2222, 8.507059e+37
    %v2224 = vand.u32 %v2212, 2147483648
    %v2225 = vor.u32 1.1754944e-38, %v2224
    %v2226 = vsel %vm2223, %v2225, %v2221
    %v2227 = vmul.f32 1.0, %v2226
    %vm2228 = vcmp.lt.f32.partialorder %v2208, %v2227
    %v2229 = vsel %vm2228, 1, 0
    %v2230 = vcvt.s32.f32 %v2229
    %v2231 = vmul.f32 %v751, %v2230
    %v2232 = vld [vmem:[#allocation3 + $0x1e0] sm:$0xf]
    %v2233 = vld [vmem:[#allocation3 + $0x1e4] sm:$0xf]
    %v2234 = vunpack.c.l.bf16 %v2232
    %v2235 = vunpack.c.l.bf16 %v2233
    %2236 = vmatpush.msra.mxu0 0.0
    %2237 = vmatpush.msra.mxu0 0.0
    %2238 = vmatpush.msra.mxu0 0.0
    %2239 = vmatpush.msra.mxu0 0.0
    %2240 = vmatpush.msra.mxu0 0.0
    %2241 = vmatpush.msra.mxu0 0.0
    %2242 = vmatpush.msra.mxu0 0.0
    %2243 = vmatpush.msra.mxu0 0.0
    %2244 = vmatpush.msra.mxu0 0.0
    %2245 = vmatpush.msra.mxu0 0.0
    %2246 = vmatpush.msra.mxu0 0.0
    %2247 = vmatpush.msra.mxu0 0.0
    %2248 = vmatpush.msra.mxu0 0.0
    %2249 = vmatpush.msra.mxu0 0.0
    %2250 = vmatpush.msra.mxu0 %v2235
    %2251 = vmatpush.msra.mxu0 %v2234
    %v2252 = vand.u32 %v42, 4294901760
    %v2253 = vsub.f32 %v42, %v2252
    %v2254 = vand.u32 %v2253, 4294901760
    %v2255 = vsub.f32 %v2253, %v2254
    %v2256 = vand.u32 %v2255, 4294901760
    %2257 = vmatmul.f32.gmra.mxu0 %v2256
    %v2258 = vpop.f32.mrf.mxu0
    %v2259 = vadd.f32 0.0, %v2258
    %2260 = vdwg.mxu0
    %2261 = vmatpush.msra.mxu0 0.0
    %2262 = vmatpush.msra.mxu0 0.0
    %2263 = vmatpush.msra.mxu0 0.0
    %2264 = vmatpush.msra.mxu0 0.0
    %2265 = vmatpush.msra.mxu0 0.0
    %2266 = vmatpush.msra.mxu0 0.0
    %2267 = vmatpush.msra.mxu0 0.0
    %2268 = vmatpush.msra.mxu0 0.0
    %2269 = vmatpush.msra.mxu0 0.0
    %2270 = vmatpush.msra.mxu0 0.0
    %2271 = vmatpush.msra.mxu0 0.0
    %2272 = vmatpush.msra.mxu0 0.0
    %2273 = vmatpush.msra.mxu0 0.0
    %2274 = vmatpush.msra.mxu0 0.0
    %v2275 = vsub.f32 %v2235, %v2235
    %v2276 = vand.u32 %v2275, 4294901760
    %v2277 = vsub.f32 %v2275, %v2276
    %v2278 = vand.u32 %v2277, 4294901760
    %2279 = vmatpush.msra.mxu0 %v2278
    %v2280 = vsub.f32 %v2234, %v2234
    %v2281 = vand.u32 %v2280, 4294901760
    %v2282 = vsub.f32 %v2280, %v2281
    %v2283 = vand.u32 %v2282, 4294901760
    %2284 = vmatpush.msra.mxu0 %v2283
    %v2285 = vand.u32 %v42, 4294901760
    %2286 = vmatmul.f32.gmra.mxu0 %v2285
    %v2287 = vpop.f32.mrf.mxu0
    %v2288 = vadd.f32 %v2259, %v2287
    %2289 = vdwg.mxu0
    %2290 = vmatpush.msra.mxu0 0.0
    %2291 = vmatpush.msra.mxu0 0.0
    %2292 = vmatpush.msra.mxu0 0.0
    %2293 = vmatpush.msra.mxu0 0.0
    %2294 = vmatpush.msra.mxu0 0.0
    %2295 = vmatpush.msra.mxu0 0.0
    %2296 = vmatpush.msra.mxu0 0.0
    %2297 = vmatpush.msra.mxu0 0.0
    %2298 = vmatpush.msra.mxu0 0.0
    %2299 = vmatpush.msra.mxu0 0.0
    %2300 = vmatpush.msra.mxu0 0.0
    %2301 = vmatpush.msra.mxu0 0.0
    %2302 = vmatpush.msra.mxu0 0.0
    %2303 = vmatpush.msra.mxu0 0.0
    %v2304 = vsub.f32 %v2235, %v2235
    %2305 = vmatpush.msra.mxu0 %v2304
    %v2306 = vsub.f32 %v2234, %v2234
    %2307 = vmatpush.msra.mxu0 %v2306
    %v2308 = vand.u32 %v42, 4294901760
    %v2309 = vsub.f32 %v42, %v2308
    %2310 = vmatmul.f32.gmra.mxu0 %v2309
    %v2311 = vpop.f32.mrf.mxu0
    %v2312 = vadd.f32 %v2288, %v2311
    %2313 = vdwg.mxu0
    %2314 = vmatpush.msra.mxu0 0.0
    %2315 = vmatpush.msra.mxu0 0.0
    %2316 = vmatpush.msra.mxu0 0.0
    %2317 = vmatpush.msra.mxu0 0.0
    %2318 = vmatpush.msra.mxu0 0.0
    %2319 = vmatpush.msra.mxu0 0.0
    %2320 = vmatpush.msra.mxu0 0.0
    %2321 = vmatpush.msra.mxu0 0.0
    %2322 = vmatpush.msra.mxu0 0.0
    %2323 = vmatpush.msra.mxu0 0.0
    %2324 = vmatpush.msra.mxu0 0.0
    %2325 = vmatpush.msra.mxu0 0.0
    %2326 = vmatpush.msra.mxu0 0.0
    %2327 = vmatpush.msra.mxu0 0.0
    %2328 = vmatpush.msra.mxu0 %v2235
    %2329 = vmatpush.msra.mxu0 %v2234
    %v2330 = vand.u32 %v42, 4294901760
    %v2331 = vsub.f32 %v42, %v2330
    %v2332 = vand.u32 %v2331, 4294901760
    %2333 = vmatmul.f32.gmra.mxu0 %v2332
    %v2334 = vpop.f32.mrf.mxu0
    %v2335 = vadd.f32 %v2312, %v2334
    %2336 = vdwg.mxu0
    %2337 = vmatpush.msra.mxu0 0.0
    %2338 = vmatpush.msra.mxu0 0.0
    %2339 = vmatpush.msra.mxu0 0.0
    %2340 = vmatpush.msra.mxu0 0.0
    %2341 = vmatpush.msra.mxu0 0.0
    %2342 = vmatpush.msra.mxu0 0.0
    %2343 = vmatpush.msra.mxu0 0.0
    %2344 = vmatpush.msra.mxu0 0.0
    %2345 = vmatpush.msra.mxu0 0.0
    %2346 = vmatpush.msra.mxu0 0.0
    %2347 = vmatpush.msra.mxu0 0.0
    %2348 = vmatpush.msra.mxu0 0.0
    %2349 = vmatpush.msra.mxu0 0.0
    %2350 = vmatpush.msra.mxu0 0.0
    %v2351 = vsub.f32 %v2235, %v2235
    %v2352 = vand.u32 %v2351, 4294901760
    %2353 = vmatpush.msra.mxu0 %v2352
    %v2354 = vsub.f32 %v2234, %v2234
    %v2355 = vand.u32 %v2354, 4294901760
    %2356 = vmatpush.msra.mxu0 %v2355
    %v2357 = vand.u32 %v42, 4294901760
    %2358 = vmatmul.f32.gmra.mxu0 %v2357
    %v2359 = vpop.f32.mrf.mxu0
    %v2360 = vadd.f32 %v2335, %v2359
    %2361 = vdwg.mxu0
    %2362 = vmatpush.msra.mxu0 0.0
    %2363 = vmatpush.msra.mxu0 0.0
    %2364 = vmatpush.msra.mxu0 0.0
    %2365 = vmatpush.msra.mxu0 0.0
    %2366 = vmatpush.msra.mxu0 0.0
    %2367 = vmatpush.msra.mxu0 0.0
    %2368 = vmatpush.msra.mxu0 0.0
    %2369 = vmatpush.msra.mxu0 0.0
    %2370 = vmatpush.msra.mxu0 0.0
    %2371 = vmatpush.msra.mxu0 0.0
    %2372 = vmatpush.msra.mxu0 0.0
    %2373 = vmatpush.msra.mxu0 0.0
    %2374 = vmatpush.msra.mxu0 0.0
    %2375 = vmatpush.msra.mxu0 0.0
    %2376 = vmatpush.msra.mxu0 %v2235
    %2377 = vmatpush.msra.mxu0 %v2234
    %v2378 = vand.u32 %v42, 4294901760
    %2379 = vmatmul.f32.gmra.mxu0 %v2378
    %v2380 = vpop.f32.mrf.mxu0
    %v2381 = vadd.f32 %v2360, %v2380
    %2382 = vdwg.mxu0
    %v2383 = vmul.f32 %v2231, %v2381
    %v2384 = vld [vmem:[#allocation3 + $0x1e8] sm:$0xf]
    %v2385 = vld [vmem:[#allocation3 + $0x1ec] sm:$0xf]
    %v2386 = vld [vmem:[#allocation3 + $0x1f0] sm:$0xf]
    %v2387 = vld [vmem:[#allocation3 + $0x1f4] sm:$0xf]
    %v2388 = vld [vmem:[#allocation3 + $0x1f8] sm:$0xf]
    %v2389 = vld [vmem:[#allocation3 + $0x1fc] sm:$0xf]
    %v2390 = vld [vmem:[#allocation3 + $0x200] sm:$0xf]
    %v2391 = vld [vmem:[#allocation3 + $0x204] sm:$0xf]
    %v2392 = vld [vmem:[#allocation3 + $0x208] sm:$0xf]
    %v2393 = vld [vmem:[#allocation3 + $0x20c] sm:$0xf]
    %v2394 = vld [vmem:[#allocation3 + $0x210] sm:$0xf]
    %v2395 = vld [vmem:[#allocation3 + $0x214] sm:$0xf]
    %v2396 = vld [vmem:[#allocation3 + $0x218] sm:$0xf]
    %v2397 = vld [vmem:[#allocation3 + $0x21c] sm:$0xf]
    %v2398 = vld [vmem:[#allocation3 + $0x220] sm:$0xf]
    %v2399 = vld [vmem:[#allocation3 + $0x224] sm:$0xf]
    %v2400 = vunpack.c.l.bf16 %v2384
    %v2401 = vunpack.c.l.bf16 %v2385
    %v2402 = vunpack.c.l.bf16 %v2386
    %v2403 = vunpack.c.l.bf16 %v2387
    %v2404 = vunpack.c.l.bf16 %v2388
    %v2405 = vunpack.c.l.bf16 %v2389
    %v2406 = vunpack.c.l.bf16 %v2390
    %v2407 = vunpack.c.l.bf16 %v2391
    %v2408 = vunpack.c.l.bf16 %v2392
    %v2409 = vunpack.c.l.bf16 %v2393
    %v2410 = vunpack.c.l.bf16 %v2394
    %v2411 = vunpack.c.l.bf16 %v2395
    %v2412 = vunpack.c.l.bf16 %v2396
    %v2413 = vunpack.c.l.bf16 %v2397
    %v2414 = vunpack.c.l.bf16 %v2398
    %v2415 = vunpack.c.l.bf16 %v2399
    %2416 = vmatpush.msra.mxu0 %v2415
    %2417 = vmatpush.msra.mxu0 %v2414
    %2418 = vmatpush.msra.mxu0 %v2413
    %2419 = vmatpush.msra.mxu0 %v2412
    %2420 = vmatpush.msra.mxu0 %v2411
    %2421 = vmatpush.msra.mxu0 %v2410
    %2422 = vmatpush.msra.mxu0 %v2409
    %2423 = vmatpush.msra.mxu0 %v2408
    %2424 = vmatpush.msra.mxu0 %v2407
    %2425 = vmatpush.msra.mxu0 %v2406
    %2426 = vmatpush.msra.mxu0 %v2405
    %2427 = vmatpush.msra.mxu0 %v2404
    %2428 = vmatpush.msra.mxu0 %v2403
    %2429 = vmatpush.msra.mxu0 %v2402
    %2430 = vmatpush.msra.mxu0 %v2401
    %2431 = vmatpush.msra.mxu0 %v2400
    %v2432 = vand.u32 %v2383, 4294901760
    %v2433 = vsub.f32 %v2383, %v2432
    %v2434 = vand.u32 %v2433, 4294901760
    %v2435 = vsub.f32 %v2433, %v2434
    %v2436 = vand.u32 %v2435, 4294901760
    %2437 = vmatmul.f32.gmra.mxu0 %v2436
    %v2438 = vpop.f32.mrf.mxu0
    %v2439 = vadd.f32 0.0, %v2438
    %2440 = vdwg.mxu0
    %v2441 = vsub.f32 %v2415, %v2415
    %v2442 = vand.u32 %v2441, 4294901760
    %v2443 = vsub.f32 %v2441, %v2442
    %v2444 = vand.u32 %v2443, 4294901760
    %2445 = vmatpush.msra.mxu0 %v2444
    %v2446 = vsub.f32 %v2414, %v2414
    %v2447 = vand.u32 %v2446, 4294901760
    %v2448 = vsub.f32 %v2446, %v2447
    %v2449 = vand.u32 %v2448, 4294901760
    %2450 = vmatpush.msra.mxu0 %v2449
    %v2451 = vsub.f32 %v2413, %v2413
    %v2452 = vand.u32 %v2451, 4294901760
    %v2453 = vsub.f32 %v2451, %v2452
    %v2454 = vand.u32 %v2453, 4294901760
    %2455 = vmatpush.msra.mxu0 %v2454
    %v2456 = vsub.f32 %v2412, %v2412
    %v2457 = vand.u32 %v2456, 4294901760
    %v2458 = vsub.f32 %v2456, %v2457
    %v2459 = vand.u32 %v2458, 4294901760
    %2460 = vmatpush.msra.mxu0 %v2459
    %v2461 = vsub.f32 %v2411, %v2411
    %v2462 = vand.u32 %v2461, 4294901760
    %v2463 = vsub.f32 %v2461, %v2462
    %v2464 = vand.u32 %v2463, 4294901760
    %2465 = vmatpush.msra.mxu0 %v2464
    %v2466 = vsub.f32 %v2410, %v2410
    %v2467 = vand.u32 %v2466, 4294901760
    %v2468 = vsub.f32 %v2466, %v2467
    %v2469 = vand.u32 %v2468, 4294901760
    %2470 = vmatpush.msra.mxu0 %v2469
    %v2471 = vsub.f32 %v2409, %v2409
    %v2472 = vand.u32 %v2471, 4294901760
    %v2473 = vsub.f32 %v2471, %v2472
    %v2474 = vand.u32 %v2473, 4294901760
    %2475 = vmatpush.msra.mxu0 %v2474
    %v2476 = vsub.f32 %v2408, %v2408
    %v2477 = vand.u32 %v2476, 4294901760
    %v2478 = vsub.f32 %v2476, %v2477
    %v2479 = vand.u32 %v2478, 4294901760
    %2480 = vmatpush.msra.mxu0 %v2479
    %v2481 = vsub.f32 %v2407, %v2407
    %v2482 = vand.u32 %v2481, 4294901760
    %v2483 = vsub.f32 %v2481, %v2482
    %v2484 = vand.u32 %v2483, 4294901760
    %2485 = vmatpush.msra.mxu0 %v2484
    %v2486 = vsub.f32 %v2406, %v2406
    %v2487 = vand.u32 %v2486, 4294901760
    %v2488 = vsub.f32 %v2486, %v2487
    %v2489 = vand.u32 %v2488, 4294901760
    %2490 = vmatpush.msra.mxu0 %v2489
    %v2491 = vsub.f32 %v2405, %v2405
    %v2492 = vand.u32 %v2491, 4294901760
    %v2493 = vsub.f32 %v2491, %v2492
    %v2494 = vand.u32 %v2493, 4294901760
    %2495 = vmatpush.msra.mxu0 %v2494
    %v2496 = vsub.f32 %v2404, %v2404
    %v2497 = vand.u32 %v2496, 4294901760
    %v2498 = vsub.f32 %v2496, %v2497
    %v2499 = vand.u32 %v2498, 4294901760
    %2500 = vmatpush.msra.mxu0 %v2499
    %v2501 = vsub.f32 %v2403, %v2403
    %v2502 = vand.u32 %v2501, 4294901760
    %v2503 = vsub.f32 %v2501, %v2502
    %v2504 = vand.u32 %v2503, 4294901760
    %2505 = vmatpush.msra.mxu0 %v2504
    %v2506 = vsub.f32 %v2402, %v2402
    %v2507 = vand.u32 %v2506, 4294901760
    %v2508 = vsub.f32 %v2506, %v2507
    %v2509 = vand.u32 %v2508, 4294901760
    %2510 = vmatpush.msra.mxu0 %v2509
    %v2511 = vsub.f32 %v2401, %v2401
    %v2512 = vand.u32 %v2511, 4294901760
    %v2513 = vsub.f32 %v2511, %v2512
    %v2514 = vand.u32 %v2513, 4294901760
    %2515 = vmatpush.msra.mxu0 %v2514
    %v2516 = vsub.f32 %v2400, %v2400
    %v2517 = vand.u32 %v2516, 4294901760
    %v2518 = vsub.f32 %v2516, %v2517
    %v2519 = vand.u32 %v2518, 4294901760
    %2520 = vmatpush.msra.mxu0 %v2519
    %v2521 = vand.u32 %v2383, 4294901760
    %2522 = vmatmul.f32.gmra.mxu0 %v2521
    %v2523 = vpop.f32.mrf.mxu0
    %v2524 = vadd.f32 %v2439, %v2523
    %2525 = vdwg.mxu0
    %v2526 = vsub.f32 %v2415, %v2415
    %2527 = vmatpush.msra.mxu0 %v2526
    %v2528 = vsub.f32 %v2414, %v2414
    %2529 = vmatpush.msra.mxu0 %v2528
    %v2530 = vsub.f32 %v2413, %v2413
    %2531 = vmatpush.msra.mxu0 %v2530
    %v2532 = vsub.f32 %v2412, %v2412
    %2533 = vmatpush.msra.mxu0 %v2532
    %v2534 = vsub.f32 %v2411, %v2411
    %2535 = vmatpush.msra.mxu0 %v2534
    %v2536 = vsub.f32 %v2410, %v2410
    %2537 = vmatpush.msra.mxu0 %v2536
    %v2538 = vsub.f32 %v2409, %v2409
    %2539 = vmatpush.msra.mxu0 %v2538
    %v2540 = vsub.f32 %v2408, %v2408
    %2541 = vmatpush.msra.mxu0 %v2540
    %v2542 = vsub.f32 %v2407, %v2407
    %2543 = vmatpush.msra.mxu0 %v2542
    %v2544 = vsub.f32 %v2406, %v2406
    %2545 = vmatpush.msra.mxu0 %v2544
    %v2546 = vsub.f32 %v2405, %v2405
    %2547 = vmatpush.msra.mxu0 %v2546
    %v2548 = vsub.f32 %v2404, %v2404
    %2549 = vmatpush.msra.mxu0 %v2548
    %v2550 = vsub.f32 %v2403, %v2403
    %2551 = vmatpush.msra.mxu0 %v2550
    %v2552 = vsub.f32 %v2402, %v2402
    %2553 = vmatpush.msra.mxu0 %v2552
    %v2554 = vsub.f32 %v2401, %v2401
    %2555 = vmatpush.msra.mxu0 %v2554
    %v2556 = vsub.f32 %v2400, %v2400
    %2557 = vmatpush.msra.mxu0 %v2556
    %v2558 = vand.u32 %v2383, 4294901760
    %v2559 = vsub.f32 %v2383, %v2558
    %2560 = vmatmul.f32.gmra.mxu0 %v2559
    %v2561 = vpop.f32.mrf.mxu0
    %v2562 = vadd.f32 %v2524, %v2561
    %2563 = vdwg.mxu0
    %2564 = vmatpush.msra.mxu0 %v2415
    %2565 = vmatpush.msra.mxu0 %v2414
    %2566 = vmatpush.msra.mxu0 %v2413
    %2567 = vmatpush.msra.mxu0 %v2412
    %2568 = vmatpush.msra.mxu0 %v2411
    %2569 = vmatpush.msra.mxu0 %v2410
    %2570 = vmatpush.msra.mxu0 %v2409
    %2571 = vmatpush.msra.mxu0 %v2408
    %2572 = vmatpush.msra.mxu0 %v2407
    %2573 = vmatpush.msra.mxu0 %v2406
    %2574 = vmatpush.msra.mxu0 %v2405
    %2575 = vmatpush.msra.mxu0 %v2404
    %2576 = vmatpush.msra.mxu0 %v2403
    %2577 = vmatpush.msra.mxu0 %v2402
    %2578 = vmatpush.msra.mxu0 %v2401
    %2579 = vmatpush.msra.mxu0 %v2400
    %v2580 = vand.u32 %v2383, 4294901760
    %v2581 = vsub.f32 %v2383, %v2580
    %v2582 = vand.u32 %v2581, 4294901760
    %2583 = vmatmul.f32.gmra.mxu0 %v2582
    %v2584 = vpop.f32.mrf.mxu0
    %v2585 = vadd.f32 %v2562, %v2584
    %2586 = vdwg.mxu0
    %v2587 = vsub.f32 %v2415, %v2415
    %v2588 = vand.u32 %v2587, 4294901760
    %2589 = vmatpush.msra.mxu0 %v2588
    %v2590 = vsub.f32 %v2414, %v2414
    %v2591 = vand.u32 %v2590, 4294901760
    %2592 = vmatpush.msra.mxu0 %v2591
    %v2593 = vsub.f32 %v2413, %v2413
    %v2594 = vand.u32 %v2593, 4294901760
    %2595 = vmatpush.msra.mxu0 %v2594
    %v2596 = vsub.f32 %v2412, %v2412
    %v2597 = vand.u32 %v2596, 4294901760
    %2598 = vmatpush.msra.mxu0 %v2597
    %v2599 = vsub.f32 %v2411, %v2411
    %v2600 = vand.u32 %v2599, 4294901760
    %2601 = vmatpush.msra.mxu0 %v2600
    %v2602 = vsub.f32 %v2410, %v2410
    %v2603 = vand.u32 %v2602, 4294901760
    %2604 = vmatpush.msra.mxu0 %v2603
    %v2605 = vsub.f32 %v2409, %v2409
    %v2606 = vand.u32 %v2605, 4294901760
    %2607 = vmatpush.msra.mxu0 %v2606
    %v2608 = vsub.f32 %v2408, %v2408
    %v2609 = vand.u32 %v2608, 4294901760
    %2610 = vmatpush.msra.mxu0 %v2609
    %v2611 = vsub.f32 %v2407, %v2407
    %v2612 = vand.u32 %v2611, 4294901760
    %2613 = vmatpush.msra.mxu0 %v2612
    %v2614 = vsub.f32 %v2406, %v2406
    %v2615 = vand.u32 %v2614, 4294901760
    %2616 = vmatpush.msra.mxu0 %v2615
    %v2617 = vsub.f32 %v2405, %v2405
    %v2618 = vand.u32 %v2617, 4294901760
    %2619 = vmatpush.msra.mxu0 %v2618
    %v2620 = vsub.f32 %v2404, %v2404
    %v2621 = vand.u32 %v2620, 4294901760
    %2622 = vmatpush.msra.mxu0 %v2621
    %v2623 = vsub.f32 %v2403, %v2403
    %v2624 = vand.u32 %v2623, 4294901760
    %2625 = vmatpush.msra.mxu0 %v2624
    %v2626 = vsub.f32 %v2402, %v2402
    %v2627 = vand.u32 %v2626, 4294901760
    %2628 = vmatpush.msra.mxu0 %v2627
    %v2629 = vsub.f32 %v2401, %v2401
    %v2630 = vand.u32 %v2629, 4294901760
    %2631 = vmatpush.msra.mxu0 %v2630
    %v2632 = vsub.f32 %v2400, %v2400
    %v2633 = vand.u32 %v2632, 4294901760
    %2634 = vmatpush.msra.mxu0 %v2633
    %v2635 = vand.u32 %v2383, 4294901760
    %2636 = vmatmul.f32.gmra.mxu0 %v2635
    %v2637 = vpop.f32.mrf.mxu0
    %v2638 = vadd.f32 %v2585, %v2637
    %2639 = vdwg.mxu0
    %2640 = vmatpush.msra.mxu0 %v2415
    %2641 = vmatpush.msra.mxu0 %v2414
    %2642 = vmatpush.msra.mxu0 %v2413
    %2643 = vmatpush.msra.mxu0 %v2412
    %2644 = vmatpush.msra.mxu0 %v2411
    %2645 = vmatpush.msra.mxu0 %v2410
    %2646 = vmatpush.msra.mxu0 %v2409
    %2647 = vmatpush.msra.mxu0 %v2408
    %2648 = vmatpush.msra.mxu0 %v2407
    %2649 = vmatpush.msra.mxu0 %v2406
    %2650 = vmatpush.msra.mxu0 %v2405
    %2651 = vmatpush.msra.mxu0 %v2404
    %2652 = vmatpush.msra.mxu0 %v2403
    %2653 = vmatpush.msra.mxu0 %v2402
    %2654 = vmatpush.msra.mxu0 %v2401
    %2655 = vmatpush.msra.mxu0 %v2400
    %v2656 = vand.u32 %v2383, 4294901760
    %2657 = vmatmul.f32.gmra.mxu0 %v2656
    %v2658 = vpop.f32.mrf.mxu0
    %v2659 = vadd.f32 %v2638, %v2658
    %2660 = vdwg.mxu0
    %v2661 = vadd.f32 %v2231, %v2659
    %v2662 = vadd.f32 %v2661, %v2183
    %2663 = vst [vmem:[#allocation6] sm:$0x3] %v2662
    // Predicated region
    $region18: #{tpu_custom_call.1} parent=1 // pred_check
      _
    $region19: #{tpu_custom_call.1} parent=1 // pred_check_branch
      %2665 = sbr.rel (0) target = $region21
    $region20: #{tpu_custom_call.1} parent=1 // pred_region
      %2667 = vsyncadd [#allocation5], 0
      %s2669 = sshll.u32 [#allocation6], 4
      %s2670 = int_to_ptr.vmem [resolvable:$true] %s2669
      %s2671 = sshll.u32 %s3, 4
      %s2672 = int_to_ptr.hbm [resolvable:$true] %s2671
      %2674 = dma.vmem_to_hbm [thread:$0]  %s2670, 32, %s2672, [#allocation5]
    $region21: #{tpu_custom_call.1} parent=1 // pred_fallthru
      _
    // Predicated region
    $region22: #{tpu_custom_call.1} parent=1 // pred_check
      _
    $region23: #{tpu_custom_call.1} parent=1 // pred_check_branch
      %2676 = sbr.rel (0) target = $region25
    $region24: #{tpu_custom_call.1} parent=1 // pred_region
      %2678 = dma.done [#allocation5], 32
    $region25: #{tpu_custom_call.1} parent=1 // pred_fallthru
      _
    %2679 = vsyncpa [#allocation4], 1
    %2680 = vsyncpa [#allocation5], 1

</llo_original>
